<compile_context>
chip_gen: v5e
topology: v5e:2x2
jax: 0.10.0
libtpu: 0.0.40
codegen_flags: <defaults>
</compile_context>

<pallas_src>
import jax
import jax.numpy as jnp
from jax.experimental import pallas as pl
from jax.experimental.pallas import tpu as pltpu

H1 = 256   # fc1_player / fc1_opponent output size
H2 = 32    # fc2 / fc3 output size


def _relu_clamp01(x):
    # ReLU followed by clamp(min=0, max=1) is exactly clip(x, 0, 1).
    return jnp.clip(x, 0.0, 1.0)


def _round_up(x, m):
    return ((x + m - 1) // m) * m


def _choose_batch_tile(batch, tb_max):
    """Pick a batch tile: multiple of 16 (bf16 sublane packing), no larger than
    the padded batch, and split into >= 2 blocks when possible so the parallel
    batch grid axis can feed both v7x TensorCores."""
    bp16 = max(16, _round_up(batch, 16))
    tb = min(tb_max, bp16)
    if bp16 // tb < 2 and bp16 >= 32:
        tb = _round_up(pl.cdiv(bp16, 2), 16)
    return tb


def nnue_kernel(xp_ref, xo_ref,
                w1p_ref, w1o_ref, b1_ref,
                w2_ref, b2_ref, w3_ref, b3_ref,
                wo_ref, bo_ref,
                out_ref,
                acc_ref):
    # grid = (batch_blocks, k_blocks); K (axis 1) is the reduction axis and
    # iterates fastest -> standard accumulator init/finalize pattern.
    k = pl.program_id(1)

    @pl.when(k == 0)
    def _():
        acc_ref[...] = jnp.zeros_like(acc_ref)

    # Accumulate the two big fc1 matmuls (bf16 x bf16 -> f32) into the two
    # 256-wide halves of the merged (tb, 512) accumulator.
    acc_ref[:, 0:H1] += jnp.dot(xp_ref[...], w1p_ref[...],
                                preferred_element_type=jnp.float32)
    acc_ref[:, H1:2 * H1] += jnp.dot(xo_ref[...], w1o_ref[...],
                                     preferred_element_type=jnp.float32)

    @pl.when(k == pl.num_programs(1) - 1)
    def _():
        # acc already holds [hp | ho] pre-activation; no concat needed.
        h1 = _relu_clamp01(acc_ref[...] + b1_ref[...])                 # (tb, 512)
        h2 = _relu_clamp01(
            jnp.dot(h1, w2_ref[...], preferred_element_type=jnp.float32)
            + b2_ref[...])                                             # (tb, 32)
        h3 = _relu_clamp01(
            jnp.dot(h2, w3_ref[...], preferred_element_type=jnp.float32)
            + b3_ref[...])                                             # (tb, 32)
        y = _relu_clamp01(
            jnp.dot(h3, wo_ref[...], preferred_element_type=jnp.float32)
            + bo_ref[...])                                             # (tb, 1)
        if out_ref.shape[0] == 1:
            # lane-dense (1, tb) output layout
            out_ref[...] = y.reshape(1, out_ref.shape[1]).astype(out_ref.dtype)
        else:
            out_ref[...] = y.astype(out_ref.dtype)


def nnue_forward(input_player, input_opponent, params, *, tk=4096, tb=256,
                 fc1_dtype=jnp.bfloat16):
    """Pallas implementation of NNUE.forward.

    input_player / input_opponent: float of shape (K,) or (B, K).
    Returns shape (1,) for 1-D inputs (like the PyTorch module) or (B, 1).

    tk: K (feature) tile; 4096 bf16 keeps double-buffered fc1 weight + input
        tiles around ~16-17 MiB (well inside v7x's 64 MiB VMEM).  On
        v5e/v6e (128 MiB VMEM) tk=8192 is a good throughput setting.
    tb: max batch tile (auto-shrunk for small batches).  256 fills the MXU
        rows on v6e/v7x; use 128 on v5e.
    fc1_dtype: storage dtype of the fc1 weights / inputs (inputs are 0/1 so
        bf16 is exact for them; fc1 weights are rounded to bf16).
    """
    (w1p, b1p, w1o, b1o, w2, b2, w3, b3, wo, bo) = params

    single = (input_player.ndim == 1)
    xp = jnp.atleast_2d(input_player).astype(jnp.float32)
    xo = jnp.atleast_2d(input_opponent).astype(jnp.float32)
    B, K = xp.shape

    assert tb % 16 == 0, "batch tile must be a multiple of 16 (bf16 sublanes)"
    tk = min(tk, K)
    assert K % tk == 0, "INPUT_SIZE must be divisible by the K tile"
    assert tk == K or tk % 128 == 0, "K tile must be lane-aligned (x128)"

    tb_eff = _choose_batch_tile(B, tb)
    Bp = _round_up(B, tb_eff)
    if Bp != B:
        xp = jnp.pad(xp, ((0, Bp - B), (0, 0)))
        xo = jnp.pad(xo, ((0, Bp - B), (0, 0)))

    # Bandwidth-bound stream in reduced precision (0/1 inputs are exact).
    xp = xp.astype(fc1_dtype)
    xo = xo.astype(fc1_dtype)
    w1p_c = w1p.astype(fc1_dtype)
    w1o_c = w1o.astype(fc1_dtype)
    # Merged fc1 bias so the epilogue adds it to the merged accumulator.
    b1 = jnp.concatenate([b1p, b1o], axis=1).astype(jnp.float32)   # (1, 512)

    bpe_in = jnp.dtype(fc1_dtype).itemsize
    f32 = 4
    vmem_est = (
        2 * 2 * tk * H1 * bpe_in          # w1p/w1o tiles, double-buffered
        + 2 * 2 * tb_eff * tk * bpe_in    # xp/xo tiles, double-buffered
        + tb_eff * 2 * H1 * f32           # merged accumulator
        + 2 * (2 * H1 * H2 + 2 * H1 + H2 * H2 + 3 * H2 + 2) * f32  # small consts
        + 2 * max(tb_eff, 128) * f32      # output block
        + (1 << 20)                       # slack
    )
    try:
        vmem_cap = getattr(pltpu.get_tpu_info(), "vmem_capacity_bytes",
                           64 * 1024 * 1024)
    except Exception:
        vmem_cap = 64 * 1024 * 1024       # conservative (v7x per-TC)
    vmem_limit = int(max(32 << 20, 1.5 * vmem_est))
    vmem_limit = min(vmem_limit, vmem_cap - (8 << 20))
    vmem_limit = max(vmem_limit, 16 << 20)

    # Lane-dense output when the batch tile is lane-aligned (or single block).
    lane_dense_out = (tb_eff % 128 == 0) or (tb_eff == Bp)
    if lane_dense_out:
        out_shape = jax.ShapeDtypeStruct((1, Bp), jnp.float32)
        out_spec = pl.BlockSpec((1, tb_eff), lambda b, k: (0, b))
    else:
        out_shape = jax.ShapeDtypeStruct((Bp, 1), jnp.float32)
        out_spec = pl.BlockSpec((tb_eff, 1), lambda b, k: (b, 0))

    out = pl.pallas_call(
        nnue_kernel,
        out_shape=out_shape,
        grid_spec=pltpu.PrefetchScalarGridSpec(
            num_scalar_prefetch=0,
            grid=(Bp // tb_eff, K // tk),
            in_specs=[
                pl.BlockSpec((tb_eff, tk), lambda b, k: (b, k)),    # input_player
                pl.BlockSpec((tb_eff, tk), lambda b, k: (b, k)),    # input_opponent
                pl.BlockSpec((tk, H1), lambda b, k: (k, 0)),        # fc1_player W
                pl.BlockSpec((tk, H1), lambda b, k: (k, 0)),        # fc1_opponent W
                pl.BlockSpec((1, 2 * H1), lambda b, k: (0, 0)),     # fc1 bias (merged)
                pl.BlockSpec((2 * H1, H2), lambda b, k: (0, 0)),    # fc2 W
                pl.BlockSpec((1, H2), lambda b, k: (0, 0)),         # fc2 b
                pl.BlockSpec((H2, H2), lambda b, k: (0, 0)),        # fc3 W
                pl.BlockSpec((1, H2), lambda b, k: (0, 0)),         # fc3 b
                pl.BlockSpec((H2, 1), lambda b, k: (0, 0)),         # output W
                pl.BlockSpec((1, 1), lambda b, k: (0, 0)),          # output b
            ],
            out_specs=out_spec,
            scratch_shapes=[pltpu.VMEM((tb_eff, 2 * H1), jnp.float32)],  # merged acc
        ),
        compiler_params=pltpu.CompilerParams(
            # batch blocks are independent -> parallel (uses both v7x TCs);
            # K is a reduction into the scratch accumulator -> arbitrary.
            dimension_semantics=("parallel", "arbitrary"),
            vmem_limit_bytes=vmem_limit,
        ),
    )(xp, xo, w1p_c, w1o_c, b1, w2, b2, w3, b3, wo, bo)

    if lane_dense_out:
        out = out.reshape(Bp, 1)
    out = out[:B]
    if single:
        return out.reshape(1)
    return out


def init_params(key, input_size):
    """Deterministic init mimicking PyTorch Linear default (U[-1/sqrt(fan_in), +])."""
    def linear(k, fan_in, fan_out):
        kw, kb = jax.random.split(k)
        bound = 1.0 / jnp.sqrt(fan_in)
        # Weight stored as (fan_in, fan_out) == PyTorch weight transposed.
        w = jax.random.uniform(kw, (fan_in, fan_out), jnp.float32, -bound, bound)
        b = jax.random.uniform(kb, (1, fan_out), jnp.float32, -bound, bound)
        return w, b

    k1, k2, k3, k4, k5 = jax.random.split(key, 5)
    w1p, b1p = linear(k1, input_size, H1)
    w1o, b1o = linear(k2, input_size, H1)
    w2, b2 = linear(k3, 2 * H1, H2)
    w3, b3 = linear(k4, H2, H2)
    wo, bo = linear(k5, H2, 1)
    return (w1p, b1p, w1o, b1o, w2, b2, w3, b3, wo, bo)


def nnue_forward_ref(xp, xo, params, *, fc1_dtype=jnp.float32):
    """Pure-JAX reference of the PyTorch forward (for correctness check).

    fc1_dtype lets the reference round the fc1 weights to the storage dtype
    used by the kernel so the comparison stays tight.
    """
    (w1p, b1p, w1o, b1o, w2, b2, w3, b3, wo, bo) = params
    w1p = w1p.astype(fc1_dtype).astype(jnp.float32)
    w1o = w1o.astype(fc1_dtype).astype(jnp.float32)
    xp = jnp.atleast_2d(xp).astype(jnp.float32)
    xo = jnp.atleast_2d(xo).astype(jnp.float32)
    hp = _relu_clamp01(xp @ w1p + b1p)
    ho = _relu_clamp01(xo @ w1o + b1o)
    c = jnp.concatenate([hp, ho], axis=-1)
    h2 = _relu_clamp01(c @ w2 + b2)
    h3 = _relu_clamp01(h2 @ w3 + b3)
    y = _relu_clamp01(h3 @ wo + bo)
    return y


if __name__ == "__main__":
    # Real NNUE uses INPUT_SIZE = 64*64*10 = 40960; use a small but
    # structurally identical size for the demo.  B=24 exercises batch padding,
    # the split into two batch blocks (parallel axis), and the K-reduction
    # grid; tk=512 exercises multiple K steps.
    INPUT_SIZE = 2048
    TK = 512
    B = 24

    key = jax.random.PRNGKey(0)
    kparams, kxp, kxo = jax.random.split(key, 3)
    params = init_params(kparams, INPUT_SIZE)

    # Sparse-ish 0/1 feature vectors, like real NNUE half-KP features.
    input_player = (jax.random.uniform(kxp, (B, INPUT_SIZE)) < 0.02).astype(jnp.float32)
    input_opponent = (jax.random.uniform(kxo, (B, INPUT_SIZE)) < 0.02).astype(jnp.float32)

    # Batched forward.
    out = nnue_forward(input_player, input_opponent, params, tk=TK)
    out = jax.block_until_ready(out)

    # Tight check against a reference that rounds fc1 weights to bf16 (the
    # same storage dtype the kernel streams); inputs are 0/1 so exact in bf16.
    ref_bf16 = nnue_forward_ref(input_player, input_opponent, params,
                                fc1_dtype=jnp.bfloat16)
    if not jnp.allclose(out, ref_bf16, atol=1e-4, rtol=1e-3):
        raise AssertionError(
            f"batched mismatch (bf16-rounded ref):\npallas={out.ravel()}\nref={ref_bf16.ravel()}")

    # Loose sanity check against the full fp32 reference (bf16 weight rounding).
    ref_f32 = nnue_forward_ref(input_player, input_opponent, params)
    if not jnp.allclose(out, ref_f32, atol=5e-2, rtol=5e-2):
        raise AssertionError(
            f"batched mismatch (f32 ref):\npallas={out.ravel()}\nref={ref_f32.ravel()}")

    # Single-sample forward (matches the PyTorch module's 1-D interface and
    # exercises the lane-dense single-batch-block output path).
    out1 = nnue_forward(input_player[0], input_opponent[0], params, tk=TK)
    out1 = jax.block_until_ready(out1)
    ref1 = nnue_forward_ref(input_player[0], input_opponent[0], params,
                            fc1_dtype=jnp.bfloat16).reshape(1)
    if out1.shape != (1,) or not jnp.allclose(out1, ref1, atol=1e-4, rtol=1e-3):
        raise AssertionError(f"single-sample mismatch: pallas={out1} ref={ref1}")

    print("KERNEL_OK")
</pallas_src>

<mosaic_0001>
module attributes {stable_mosaic.version = 11 : i64} {
  func.func @nnue_kernel(%arg0: i32, %arg1: i32, %arg2: memref<16x512xbf16, #tpu.memory_space<vmem>>, %arg3: memref<16x512xbf16, #tpu.memory_space<vmem>>, %arg4: memref<512x256xbf16, #tpu.memory_space<vmem>>, %arg5: memref<512x256xbf16, #tpu.memory_space<vmem>>, %arg6: memref<1x512xf32, #tpu.memory_space<vmem>>, %arg7: memref<512x32xf32, #tpu.memory_space<vmem>>, %arg8: memref<1x32xf32, #tpu.memory_space<vmem>>, %arg9: memref<32x32xf32, #tpu.memory_space<vmem>>, %arg10: memref<1x32xf32, #tpu.memory_space<vmem>>, %arg11: memref<32x1xf32, #tpu.memory_space<vmem>>, %arg12: memref<1x1xf32, #tpu.memory_space<vmem>>, %arg13: memref<16x1xf32, #tpu.memory_space<vmem>>, %arg14: memref<16x512xf32, #tpu.memory_space<vmem>>) attributes {dimension_semantics = [#tpu.dimension_semantics<parallel>, #tpu.dimension_semantics<arbitrary>], iteration_bounds = array<i64: 2, 4>, scalar_prefetch = 0 : i64, scratch_operands = 1 : i64, tpu.core_type = #tpu.core_type<tc>, window_params = [{transform_indices = @transform_0, window_bounds = array<i64: 16, 512>}, {transform_indices = @transform_1, window_bounds = array<i64: 16, 512>}, {transform_indices = @transform_2, window_bounds = array<i64: 512, 256>}, {transform_indices = @transform_3, window_bounds = array<i64: 512, 256>}, {pipeline_mode = #tpu.pipeline_mode<synchronous>, transform_indices = @transform_4, window_bounds = array<i64: 1, 512>}, {pipeline_mode = #tpu.pipeline_mode<synchronous>, transform_indices = @transform_5, window_bounds = array<i64: 512, 32>}, {pipeline_mode = #tpu.pipeline_mode<synchronous>, transform_indices = @transform_6, window_bounds = array<i64: 1, 32>}, {pipeline_mode = #tpu.pipeline_mode<synchronous>, transform_indices = @transform_7, window_bounds = array<i64: 32, 32>}, {pipeline_mode = #tpu.pipeline_mode<synchronous>, transform_indices = @transform_8, window_bounds = array<i64: 1, 32>}, {pipeline_mode = #tpu.pipeline_mode<synchronous>, transform_indices = @transform_9, window_bounds = array<i64: 32, 1>}, {pipeline_mode = #tpu.pipeline_mode<synchronous>, transform_indices = @transform_10, window_bounds = array<i64: 1, 1>}, {transform_indices = @transform_11, window_bounds = array<i64: 16, 1>}]} {
    %c0_i32 = arith.constant 0 : i32
    %0 = arith.cmpi eq, %arg1, %c0_i32 : i32
    %1 = arith.extui %0 : i1 to i32
    %c0_i32_0 = arith.constant 0 : i32
    %2 = arith.cmpi ne, %1, %c0_i32_0 : i32
    scf.if %2 {
      %cst_17 = arith.constant 0.000000e+00 : f32
      %18 = vector.broadcast %cst_17 : f32 to vector<16x512xf32>
      %c0_18 = arith.constant 0 : index
      %c0_19 = arith.constant 0 : index
      %19 = vector.load %arg14[%c0_18, %c0_19] : memref<16x512xf32, #tpu.memory_space<vmem>>, vector<16x512xf32>
      tpu.vector_store %arg14[%c0_18, %c0_19], %18 {strides = array<i32>} : memref<16x512xf32, #tpu.memory_space<vmem>>, vector<16x512xf32>,
    } else {
    }
    %c0 = arith.constant 0 : index
    %c0_1 = arith.constant 0 : index
    %3 = vector.load %arg14[%c0, %c0_1] : memref<16x512xf32, #tpu.memory_space<vmem>>, vector<16x256xf32>
    %c0_2 = arith.constant 0 : index
    %c0_3 = arith.constant 0 : index
    %4 = vector.load %arg2[%c0_2, %c0_3] : memref<16x512xbf16, #tpu.memory_space<vmem>>, vector<16x512xbf16>
    %c0_4 = arith.constant 0 : index
    %c0_5 = arith.constant 0 : index
    %5 = vector.load %arg4[%c0_4, %c0_5] : memref<512x256xbf16, #tpu.memory_space<vmem>>, vector<512x256xbf16>
    %cst = arith.constant dense<0.000000e+00> : vector<16x256xf32>
    %6 = tpu.matmul %4, %5, %cst {dimension_numbers = #tpu.dot_dimension_numbers<[1], [0], [0], [1], [0, 0, 1, 1], [], []>} : vector<16x512xbf16>, vector<512x256xbf16>, vector<16x256xf32> -> vector<16x256xf32>
    %7 = arith.addf %3, %6 : vector<16x256xf32>
    %c0_6 = arith.constant 0 : index
    %c0_7 = arith.constant 0 : index
    %8 = vector.load %arg14[%c0_6, %c0_7] : memref<16x512xf32, #tpu.memory_space<vmem>>, vector<16x256xf32>
    tpu.vector_store %arg14[%c0_6, %c0_7], %7 {strides = array<i32>} : memref<16x512xf32, #tpu.memory_space<vmem>>, vector<16x256xf32>,
    %c0_8 = arith.constant 0 : index
    %c256 = arith.constant 256 : index
    %9 = vector.load %arg14[%c0_8, %c256] : memref<16x512xf32, #tpu.memory_space<vmem>>, vector<16x256xf32>
    %c0_9 = arith.constant 0 : index
    %c0_10 = arith.constant 0 : index
    %10 = vector.load %arg3[%c0_9, %c0_10] : memref<16x512xbf16, #tpu.memory_space<vmem>>, vector<16x512xbf16>
    %c0_11 = arith.constant 0 : index
    %c0_12 = arith.constant 0 : index
    %11 = vector.load %arg5[%c0_11, %c0_12] : memref<512x256xbf16, #tpu.memory_space<vmem>>, vector<512x256xbf16>
    %cst_13 = arith.constant dense<0.000000e+00> : vector<16x256xf32>
    %12 = tpu.matmul %10, %11, %cst_13 {dimension_numbers = #tpu.dot_dimension_numbers<[1], [0], [0], [1], [0, 0, 1, 1], [], []>} : vector<16x512xbf16>, vector<512x256xbf16>, vector<16x256xf32> -> vector<16x256xf32>
    %13 = arith.addf %9, %12 : vector<16x256xf32>
    %c0_14 = arith.constant 0 : index
    %c256_15 = arith.constant 256 : index
    %14 = vector.load %arg14[%c0_14, %c256_15] : memref<16x512xf32, #tpu.memory_space<vmem>>, vector<16x256xf32>
    tpu.vector_store %arg14[%c0_14, %c256_15], %13 {strides = array<i32>} : memref<16x512xf32, #tpu.memory_space<vmem>>, vector<16x256xf32>,
    %c3_i32 = arith.constant 3 : i32
    %15 = arith.cmpi eq, %arg1, %c3_i32 : i32
    %16 = arith.extui %15 : i1 to i32
    %c0_i32_16 = arith.constant 0 : i32
    %17 = arith.cmpi ne, %16, %c0_i32_16 : i32
    scf.if %17 {
      %c0_17 = arith.constant 0 : index
      %c0_18 = arith.constant 0 : index
      %18 = vector.load %arg14[%c0_17, %c0_18] : memref<16x512xf32, #tpu.memory_space<vmem>>, vector<16x512xf32>
      %c0_19 = arith.constant 0 : index
      %c0_20 = arith.constant 0 : index
      %19 = vector.load %arg6[%c0_19, %c0_20] : memref<1x512xf32, #tpu.memory_space<vmem>>, vector<1x512xf32>
      %20 = vector.broadcast %19 : vector<1x512xf32> to vector<16x512xf32>
      %21 = arith.addf %18, %20 : vector<16x512xf32>
      %cst_21 = arith.constant 0.000000e+00 : f32
      %cst_22 = arith.constant 1.000000e+00 : f32
      %22 = vector.broadcast %cst_21 : f32 to vector<16x512xf32>
      %23 = arith.maximumf %22, %21 : vector<16x512xf32>
      %24 = vector.broadcast %cst_22 : f32 to vector<16x512xf32>
      %25 = arith.minimumf %24, %23 : vector<16x512xf32>
      %c0_23 = arith.constant 0 : index
      %c0_24 = arith.constant 0 : index
      %26 = vector.load %arg7[%c0_23, %c0_24] : memref<512x32xf32, #tpu.memory_space<vmem>>, vector<512x32xf32>
      %cst_25 = arith.constant dense<0.000000e+00> : vector<16x32xf32>
      %27 = tpu.matmul %25, %26, %cst_25 {dimension_numbers = #tpu.dot_dimension_numbers<[1], [0], [0], [1], [0, 0, 1, 1], [], []>} : vector<16x512xf32>, vector<512x32xf32>, vector<16x32xf32> -> vector<16x32xf32>
      %c0_26 = arith.constant 0 : index
      %c0_27 = arith.constant 0 : index
      %28 = vector.load %arg8[%c0_26, %c0_27] : memref<1x32xf32, #tpu.memory_space<vmem>>, vector<1x32xf32>
      %29 = vector.broadcast %28 : vector<1x32xf32> to vector<16x32xf32>
      %30 = arith.addf %27, %29 : vector<16x32xf32>
      %cst_28 = arith.constant 0.000000e+00 : f32
      %cst_29 = arith.constant 1.000000e+00 : f32
      %31 = vector.broadcast %cst_28 : f32 to vector<16x32xf32>
      %32 = arith.maximumf %31, %30 : vector<16x32xf32>
      %33 = vector.broadcast %cst_29 : f32 to vector<16x32xf32>
      %34 = arith.minimumf %33, %32 : vector<16x32xf32>
      %c0_30 = arith.constant 0 : index
      %c0_31 = arith.constant 0 : index
      %35 = vector.load %arg9[%c0_30, %c0_31] : memref<32x32xf32, #tpu.memory_space<vmem>>, vector<32x32xf32>
      %cst_32 = arith.constant dense<0.000000e+00> : vector<16x32xf32>
      %36 = tpu.matmul %34, %35, %cst_32 {dimension_numbers = #tpu.dot_dimension_numbers<[1], [0], [0], [1], [0, 0, 1, 1], [], []>} : vector<16x32xf32>, vector<32x32xf32>, vector<16x32xf32> -> vector<16x32xf32>
      %c0_33 = arith.constant 0 : index
      %c0_34 = arith.constant 0 : index
      %37 = vector.load %arg10[%c0_33, %c0_34] : memref<1x32xf32, #tpu.memory_space<vmem>>, vector<1x32xf32>
      %38 = vector.broadcast %37 : vector<1x32xf32> to vector<16x32xf32>
      %39 = arith.addf %36, %38 : vector<16x32xf32>
      %cst_35 = arith.constant 0.000000e+00 : f32
      %cst_36 = arith.constant 1.000000e+00 : f32
      %40 = vector.broadcast %cst_35 : f32 to vector<16x32xf32>
      %41 = arith.maximumf %40, %39 : vector<16x32xf32>
      %42 = vector.broadcast %cst_36 : f32 to vector<16x32xf32>
      %43 = arith.minimumf %42, %41 : vector<16x32xf32>
      %c0_37 = arith.constant 0 : index
      %c0_38 = arith.constant 0 : index
      %44 = vector.load %arg11[%c0_37, %c0_38] : memref<32x1xf32, #tpu.memory_space<vmem>>, vector<32x1xf32>
      %cst_39 = arith.constant dense<0.000000e+00> : vector<16x1xf32>
      %45 = tpu.matmul %43, %44, %cst_39 {dimension_numbers = #tpu.dot_dimension_numbers<[1], [0], [0], [1], [0, 0, 1, 1], [], []>} : vector<16x32xf32>, vector<32x1xf32>, vector<16x1xf32> -> vector<16x1xf32>
      %c0_40 = arith.constant 0 : index
      %c0_41 = arith.constant 0 : index
      %46 = vector.load %arg12[%c0_40, %c0_41] : memref<1x1xf32, #tpu.memory_space<vmem>>, vector<1x1xf32>
      %47 = vector.broadcast %46 : vector<1x1xf32> to vector<16x1xf32>
      %48 = arith.addf %45, %47 : vector<16x1xf32>
      %cst_42 = arith.constant 0.000000e+00 : f32
      %cst_43 = arith.constant 1.000000e+00 : f32
      %49 = vector.broadcast %cst_42 : f32 to vector<16x1xf32>
      %50 = arith.maximumf %49, %48 : vector<16x1xf32>
      %51 = vector.broadcast %cst_43 : f32 to vector<16x1xf32>
      %52 = arith.minimumf %51, %50 : vector<16x1xf32>
      %c0_44 = arith.constant 0 : index
      %c0_45 = arith.constant 0 : index
      %53 = vector.load %arg13[%c0_44, %c0_45] : memref<16x1xf32, #tpu.memory_space<vmem>>, vector<16x1xf32>
      tpu.vector_store %arg13[%c0_44, %c0_45], %52 {strides = array<i32>} : memref<16x1xf32, #tpu.memory_space<vmem>>, vector<16x1xf32>,
    } else {
    }
    return
  }
  func.func @transform_0(%arg0: i32, %arg1: i32) -> (i32, i32) {
    %c0_i32 = arith.constant 0 : i32
    return %arg0, %arg1 : i32, i32
  }
  func.func @transform_1(%arg0: i32, %arg1: i32) -> (i32, i32) {
    %c0_i32 = arith.constant 0 : i32
    return %arg0, %arg1 : i32, i32
  }
  func.func @transform_2(%arg0: i32, %arg1: i32) -> (i32, i32) {
    %c0_i32 = arith.constant 0 : i32
    %c0_i32_0 = arith.constant 0 : i32
    return %arg1, %c0_i32 : i32, i32
  }
  func.func @transform_3(%arg0: i32, %arg1: i32) -> (i32, i32) {
    %c0_i32 = arith.constant 0 : i32
    %c0_i32_0 = arith.constant 0 : i32
    return %arg1, %c0_i32 : i32, i32
  }
  func.func @transform_4(%arg0: i32, %arg1: i32) -> (i32, i32) {
    %c0_i32 = arith.constant 0 : i32
    %c0_i32_0 = arith.constant 0 : i32
    %c0_i32_1 = arith.constant 0 : i32
    return %c0_i32, %c0_i32_0 : i32, i32
  }
  func.func @transform_5(%arg0: i32, %arg1: i32) -> (i32, i32) {
    %c0_i32 = arith.constant 0 : i32
    %c0_i32_0 = arith.constant 0 : i32
    %c0_i32_1 = arith.constant 0 : i32
    return %c0_i32, %c0_i32_0 : i32, i32
  }
  func.func @transform_6(%arg0: i32, %arg1: i32) -> (i32, i32) {
    %c0_i32 = arith.constant 0 : i32
    %c0_i32_0 = arith.constant 0 : i32
    %c0_i32_1 = arith.constant 0 : i32
    return %c0_i32, %c0_i32_0 : i32, i32
  }
  func.func @transform_7(%arg0: i32, %arg1: i32) -> (i32, i32) {
    %c0_i32 = arith.constant 0 : i32
    %c0_i32_0 = arith.constant 0 : i32
    %c0_i32_1 = arith.constant 0 : i32
    return %c0_i32, %c0_i32_0 : i32, i32
  }
  func.func @transform_8(%arg0: i32, %arg1: i32) -> (i32, i32) {
    %c0_i32 = arith.constant 0 : i32
    %c0_i32_0 = arith.constant 0 : i32
    %c0_i32_1 = arith.constant 0 : i32
    return %c0_i32, %c0_i32_0 : i32, i32
  }
  func.func @transform_9(%arg0: i32, %arg1: i32) -> (i32, i32) {
    %c0_i32 = arith.constant 0 : i32
    %c0_i32_0 = arith.constant 0 : i32
    %c0_i32_1 = arith.constant 0 : i32
    return %c0_i32, %c0_i32_0 : i32, i32
  }
  func.func @transform_10(%arg0: i32, %arg1: i32) -> (i32, i32) {
    %c0_i32 = arith.constant 0 : i32
    %c0_i32_0 = arith.constant 0 : i32
    %c0_i32_1 = arith.constant 0 : i32
    return %c0_i32, %c0_i32_0 : i32, i32
  }
  func.func @transform_11(%arg0: i32, %arg1: i32) -> (i32, i32) {
    %c0_i32 = arith.constant 0 : i32
    %c0_i32_0 = arith.constant 0 : i32
    return %arg0, %c0_i32 : i32, i32
  }
}

</mosaic_0001>

<llo_original>
// kernel: tpu_custom_call.1
$region0: #{tpu_custom_call.1}
  #allocation0 [shape = 'u32[]', space=smem, size = 0x4, offset = 0x4, fixed_abs, tag = 'smem constant byte address 0x4 - core index']
  #allocation1 [shape = 'u32[72,128]{1,0:T(1,128)}', space=vmem, size = 0x9000, scoped, tag = 'internal scratch']
  #allocation2 [shape = 'f32[16,512]{1,0:T(8,128)}', space=vmem, size = 0x8000, scoped, tag = 'scratch operand']
  #allocation3 [shape = 'f32[1,1]{1,0:T(1,128)S(1)}', space=vmem, size = 0x200, scoped, tag = 'scoped memory for tpu_custom_call.1']
  %s0 = inlined_call_operand.vmem [shape: bf16[32,2048], index: 0, kind: input, shape index: {}]
  %s1 = inlined_call_operand.vmem [shape: bf16[32,2048], index: 1, kind: input, shape index: {}]
  %s2 = inlined_call_operand.hbm [shape: bf16[2048,256], index: 2, kind: input, shape index: {}]
  %s3 = inlined_call_operand.hbm [shape: bf16[2048,256], index: 3, kind: input, shape index: {}]
  %s4 = inlined_call_operand.vmem [shape: f32[1,512], index: 4, kind: input, shape index: {}]
  %s5 = inlined_call_operand.vmem [shape: f32[512,32], index: 5, kind: input, shape index: {}]
  %s6 = inlined_call_operand.vmem [shape: f32[1,32], index: 6, kind: input, shape index: {}]
  %s7 = inlined_call_operand.vmem [shape: f32[32,32], index: 7, kind: input, shape index: {}]
  %s8 = inlined_call_operand.vmem [shape: f32[1,32], index: 8, kind: input, shape index: {}]
  %s9 = inlined_call_operand.vmem [shape: f32[32,1], index: 9, kind: input, shape index: {}]
  %s10 = inlined_call_operand.<no memory space> [shape: f32[1,1], index: 10, kind: input, shape index: {}]
  %s11 = inlined_call_operand.vmem [shape: f32[32,1], index: 11, kind: output, shape index: {}]
  %s12 = sld [smem:[#allocation0]]
  $region139: #{tpu_custom_call.1} parent=0
    _
  %s14 = ssub.s32 1, %s12
  %s15 = scalar_select 0, %s14, %s12
  %v16 = vstv %s10
  %17 = vst [vmem:[#allocation3] sm:$0x1] %v16
  $region1: #{tpu_custom_call.1} parent=0
    #allocation4 [shape = 'u8[32768]{0}', space=vmem, size = 0x8000, scoped, tag = 'input window, operand 0']
    #allocation5 [shape = 'u8[32768]{0}', space=vmem, size = 0x8000, scoped, tag = 'input window, operand 1']
    #allocation6 [shape = 'u8[524288]{0}', space=vmem, size = 0x80000, scoped, tag = 'input window, operand 2']
    #allocation7 [shape = 's32[2]{0}', space=sflag, size = 0x8, scoped, tag = 'scoped memory for tpu_custom_call.1']
    #allocation8 [shape = 'u8[524288]{0}', space=vmem, size = 0x80000, scoped, tag = 'input window, operand 3']
    #allocation9 [shape = 's32[2]{0}', space=sflag, size = 0x8, scoped, tag = 'scoped memory for tpu_custom_call.1']
    %18 = vsyncpa [#allocation7], 0
    %s19 = scalar_lea.sflag [#allocation7], 1
    %20 = vsyncpa %s19, 0
    %21 = vsyncpa [#allocation9], 0
    %s22 = scalar_lea.sflag [#allocation9], 1
    %23 = vsyncpa %s22, 0
    loop: start=0, step=1, limit=10
    $region2: #{tpu_custom_call.1} parent=1 // loop_pre_header
      _
    $region3: #{tpu_custom_call.1} parent=1 // loop_header
      %s25 = sphi 0, %s29
      %p26 = scmp.ge.s32.totalorder %s25, 10
      %s32 = sphi 0, %s44
      %s33 = sphi 0, %s40
      %s34 = sphi 0, %s32
      %s35 = sphi 0, %s33
      %s36 = sphi 0, %s34
      %s37 = sphi 0, %s35
      %s49 = sphi 0, %s51
      %s52 = sphi 0, %s49
      %s53 = sphi 0, %s52
      %s69 = sphi 0, %s53
      %s77 = sphi 0, %s79
      %s80 = sphi 0, %s77
      %s81 = sphi 0, %s80
      %s97 = sphi 0, %s81
      %s103 = sphi 0, %s105
      %s106 = sphi 0, %s103
      %s107 = sphi 0, %s106
      %s123 = sphi 0, %s107
      %s129 = sphi 0, %s131
      %s132 = sphi 0, %s129
      %s133 = sphi 0, %s132
      %s149 = sphi 0, %s133
      %s153 = sphi 0, %s153
      %s155 = sphi 0, %s153
      %s156 = sphi 0, %s155
      %s170 = sphi 0, %s156
      %s174 = sphi 0, %s174
      %s176 = sphi 0, %s174
      %s177 = sphi 0, %s176
      %s191 = sphi 0, %s177
      %s195 = sphi 0, %s195
      %s197 = sphi 0, %s195
      %s198 = sphi 0, %s197
      %s212 = sphi 0, %s198
      %s216 = sphi 0, %s216
      %s218 = sphi 0, %s216
      %s219 = sphi 0, %s218
      %s233 = sphi 0, %s219
      %s237 = sphi 0, %s237
      %s239 = sphi 0, %s237
      %s240 = sphi 0, %s239
      %s254 = sphi 0, %s240
      %s258 = sphi 0, %s258
      %s260 = sphi 0, %s258
      %s261 = sphi 0, %s260
      %s275 = sphi 0, %s261
      %s279 = sphi 0, %s279
      %s281 = sphi 0, %s279
      %s282 = sphi 0, %s281
      %s296 = sphi 0, %s282
      %s302 = sphi 0, %s304
      %s305 = sphi 0, %s302
      %s306 = sphi 0, %s305
      %s322 = sphi 0, %s306
    $region4: #{tpu_custom_call.1} parent=1 // loop_header_branch
      %28 = sbr.rel (%p26) target = $region8
    $region5: #{tpu_custom_call.1} parent=1 // loop_body
      %s30 = ssub.s32 %s25, 1
      %s31 = ssub.s32 %s25, 2
      %s38 = sadd.s32 1, %s33
      %p39 = scmp.ge.s32.totalorder %s38, 4
      %s40 = scalar_select %p39, 0, %s38
      %s41 = sadd.s32 1, %s32
      %s42 = scalar_select %p39, %s41, %s32
      %p43 = scmp.ge.s32.totalorder %s42, 2
      %s44 = scalar_select %p43, 0, %s42
      %s45 = ssub.s32 %s32, %s44
      %s46 = ssub.s32 %s33, %s40
      %s47 = sor.u32 %s45, %s46
      %p48 = scmp.eq.s32.totalorder %s47, 0
      %s50 = sadd.s32 %s49, 1
      %s51 = scalar_select %p48, %s49, %s50
      %p54 = pneg %p48
      %p55 = scmp.eq.s32.totalorder %s25, 7
      %p56 = por %p54, %p55
      %p57 = scmp.ne.s32.totalorder %s49, %s52
      %p58 = scmp.eq.s32.totalorder %s25, 0
      %p59 = por %p57, %p58
      %p60 = scmp.ne.s32.totalorder %s49, %s52
      %p61 = scmp.eq.s32.totalorder %s30, 7
      %p62 = por %p60, %p61
      %p63 = scmp.ne.s32.totalorder %s52, %s53
      %p64 = scmp.eq.s32.totalorder %s30, 0
      %p65 = por %p63, %p64
      %p66 = scmp.ne.s32.totalorder %s52, %s53
      %p67 = scmp.eq.s32.totalorder %s31, 7
      %p68 = por %p66, %p67
      %p70 = scmp.ne.s32.totalorder %s53, %s69
      %p71 = scmp.eq.s32.totalorder %s31, 0
      %p72 = por %p70, %p71
      %s73 = ssub.s32 %s32, %s44
      %s74 = ssub.s32 %s33, %s40
      %s75 = sor.u32 %s73, %s74
      %p76 = scmp.eq.s32.totalorder %s75, 0
      %s78 = sadd.s32 %s77, 1
      %s79 = scalar_select %p76, %s77, %s78
      %p82 = pneg %p76
      %p83 = scmp.eq.s32.totalorder %s25, 7
      %p84 = por %p82, %p83
      %p85 = scmp.ne.s32.totalorder %s77, %s80
      %p86 = scmp.eq.s32.totalorder %s25, 0
      %p87 = por %p85, %p86
      %p88 = scmp.ne.s32.totalorder %s77, %s80
      %p89 = scmp.eq.s32.totalorder %s30, 7
      %p90 = por %p88, %p89
      %p91 = scmp.ne.s32.totalorder %s80, %s81
      %p92 = scmp.eq.s32.totalorder %s30, 0
      %p93 = por %p91, %p92
      %p94 = scmp.ne.s32.totalorder %s80, %s81
      %p95 = scmp.eq.s32.totalorder %s31, 7
      %p96 = por %p94, %p95
      %p98 = scmp.ne.s32.totalorder %s81, %s97
      %p99 = scmp.eq.s32.totalorder %s31, 0
      %p100 = por %p98, %p99
      %s101 = ssub.s32 %s33, %s40
      %p102 = scmp.eq.s32.totalorder %s101, 0
      %s104 = sadd.s32 %s103, 1
      %s105 = scalar_select %p102, %s103, %s104
      %p108 = pneg %p102
      %p109 = scmp.eq.s32.totalorder %s25, 7
      %p110 = por %p108, %p109
      %p111 = scmp.ne.s32.totalorder %s103, %s106
      %p112 = scmp.eq.s32.totalorder %s25, 0
      %p113 = por %p111, %p112
      %p114 = scmp.ne.s32.totalorder %s103, %s106
      %p115 = scmp.eq.s32.totalorder %s30, 7
      %p116 = por %p114, %p115
      %p117 = scmp.ne.s32.totalorder %s106, %s107
      %p118 = scmp.eq.s32.totalorder %s30, 0
      %p119 = por %p117, %p118
      %p120 = scmp.ne.s32.totalorder %s106, %s107
      %p121 = scmp.eq.s32.totalorder %s31, 7
      %p122 = por %p120, %p121
      %p124 = scmp.ne.s32.totalorder %s107, %s123
      %p125 = scmp.eq.s32.totalorder %s31, 0
      %p126 = por %p124, %p125
      %s127 = ssub.s32 %s33, %s40
      %p128 = scmp.eq.s32.totalorder %s127, 0
      %s130 = sadd.s32 %s129, 1
      %s131 = scalar_select %p128, %s129, %s130
      %p134 = pneg %p128
      %p135 = scmp.eq.s32.totalorder %s25, 7
      %p136 = por %p134, %p135
      %p137 = scmp.ne.s32.totalorder %s129, %s132
      %p138 = scmp.eq.s32.totalorder %s25, 0
      %p139 = por %p137, %p138
      %p140 = scmp.ne.s32.totalorder %s129, %s132
      %p141 = scmp.eq.s32.totalorder %s30, 7
      %p142 = por %p140, %p141
      %p143 = scmp.ne.s32.totalorder %s132, %s133
      %p144 = scmp.eq.s32.totalorder %s30, 0
      %p145 = por %p143, %p144
      %p146 = scmp.ne.s32.totalorder %s132, %s133
      %p147 = scmp.eq.s32.totalorder %s31, 7
      %p148 = por %p146, %p147
      %p150 = scmp.ne.s32.totalorder %s133, %s149
      %p151 = scmp.eq.s32.totalorder %s31, 0
      %p152 = por %p150, %p151
      %s154 = sadd.s32 %s153, 1
      %p157 = scmp.eq.s32.totalorder %s25, 7
      %p158 = scmp.ne.s32.totalorder %s153, %s155
      %p159 = scmp.eq.s32.totalorder %s25, 0
      %p160 = por %p158, %p159
      %p161 = scmp.ne.s32.totalorder %s153, %s155
      %p162 = scmp.eq.s32.totalorder %s30, 7
      %p163 = por %p161, %p162
      %p164 = scmp.ne.s32.totalorder %s155, %s156
      %p165 = scmp.eq.s32.totalorder %s30, 0
      %p166 = por %p164, %p165
      %p167 = scmp.ne.s32.totalorder %s155, %s156
      %p168 = scmp.eq.s32.totalorder %s31, 7
      %p169 = por %p167, %p168
      %p171 = scmp.ne.s32.totalorder %s156, %s170
      %p172 = scmp.eq.s32.totalorder %s31, 0
      %p173 = por %p171, %p172
      %s175 = sadd.s32 %s174, 1
      %p178 = scmp.eq.s32.totalorder %s25, 7
      %p179 = scmp.ne.s32.totalorder %s174, %s176
      %p180 = scmp.eq.s32.totalorder %s25, 0
      %p181 = por %p179, %p180
      %p182 = scmp.ne.s32.totalorder %s174, %s176
      %p183 = scmp.eq.s32.totalorder %s30, 7
      %p184 = por %p182, %p183
      %p185 = scmp.ne.s32.totalorder %s176, %s177
      %p186 = scmp.eq.s32.totalorder %s30, 0
      %p187 = por %p185, %p186
      %p188 = scmp.ne.s32.totalorder %s176, %s177
      %p189 = scmp.eq.s32.totalorder %s31, 7
      %p190 = por %p188, %p189
      %p192 = scmp.ne.s32.totalorder %s177, %s191
      %p193 = scmp.eq.s32.totalorder %s31, 0
      %p194 = por %p192, %p193
      %s196 = sadd.s32 %s195, 1
      %p199 = scmp.eq.s32.totalorder %s25, 7
      %p200 = scmp.ne.s32.totalorder %s195, %s197
      %p201 = scmp.eq.s32.totalorder %s25, 0
      %p202 = por %p200, %p201
      %p203 = scmp.ne.s32.totalorder %s195, %s197
      %p204 = scmp.eq.s32.totalorder %s30, 7
      %p205 = por %p203, %p204
      %p206 = scmp.ne.s32.totalorder %s197, %s198
      %p207 = scmp.eq.s32.totalorder %s30, 0
      %p208 = por %p206, %p207
      %p209 = scmp.ne.s32.totalorder %s197, %s198
      %p210 = scmp.eq.s32.totalorder %s31, 7
      %p211 = por %p209, %p210
      %p213 = scmp.ne.s32.totalorder %s198, %s212
      %p214 = scmp.eq.s32.totalorder %s31, 0
      %p215 = por %p213, %p214
      %s217 = sadd.s32 %s216, 1
      %p220 = scmp.eq.s32.totalorder %s25, 7
      %p221 = scmp.ne.s32.totalorder %s216, %s218
      %p222 = scmp.eq.s32.totalorder %s25, 0
      %p223 = por %p221, %p222
      %p224 = scmp.ne.s32.totalorder %s216, %s218
      %p225 = scmp.eq.s32.totalorder %s30, 7
      %p226 = por %p224, %p225
      %p227 = scmp.ne.s32.totalorder %s218, %s219
      %p228 = scmp.eq.s32.totalorder %s30, 0
      %p229 = por %p227, %p228
      %p230 = scmp.ne.s32.totalorder %s218, %s219
      %p231 = scmp.eq.s32.totalorder %s31, 7
      %p232 = por %p230, %p231
      %p234 = scmp.ne.s32.totalorder %s219, %s233
      %p235 = scmp.eq.s32.totalorder %s31, 0
      %p236 = por %p234, %p235
      %s238 = sadd.s32 %s237, 1
      %p241 = scmp.eq.s32.totalorder %s25, 7
      %p242 = scmp.ne.s32.totalorder %s237, %s239
      %p243 = scmp.eq.s32.totalorder %s25, 0
      %p244 = por %p242, %p243
      %p245 = scmp.ne.s32.totalorder %s237, %s239
      %p246 = scmp.eq.s32.totalorder %s30, 7
      %p247 = por %p245, %p246
      %p248 = scmp.ne.s32.totalorder %s239, %s240
      %p249 = scmp.eq.s32.totalorder %s30, 0
      %p250 = por %p248, %p249
      %p251 = scmp.ne.s32.totalorder %s239, %s240
      %p252 = scmp.eq.s32.totalorder %s31, 7
      %p253 = por %p251, %p252
      %p255 = scmp.ne.s32.totalorder %s240, %s254
      %p256 = scmp.eq.s32.totalorder %s31, 0
      %p257 = por %p255, %p256
      %s259 = sadd.s32 %s258, 1
      %p262 = scmp.eq.s32.totalorder %s25, 7
      %p263 = scmp.ne.s32.totalorder %s258, %s260
      %p264 = scmp.eq.s32.totalorder %s25, 0
      %p265 = por %p263, %p264
      %p266 = scmp.ne.s32.totalorder %s258, %s260
      %p267 = scmp.eq.s32.totalorder %s30, 7
      %p268 = por %p266, %p267
      %p269 = scmp.ne.s32.totalorder %s260, %s261
      %p270 = scmp.eq.s32.totalorder %s30, 0
      %p271 = por %p269, %p270
      %p272 = scmp.ne.s32.totalorder %s260, %s261
      %p273 = scmp.eq.s32.totalorder %s31, 7
      %p274 = por %p272, %p273
      %p276 = scmp.ne.s32.totalorder %s261, %s275
      %p277 = scmp.eq.s32.totalorder %s31, 0
      %p278 = por %p276, %p277
      %s280 = sadd.s32 %s279, 1
      %p283 = scmp.eq.s32.totalorder %s25, 7
      %p284 = scmp.ne.s32.totalorder %s279, %s281
      %p285 = scmp.eq.s32.totalorder %s25, 0
      %p286 = por %p284, %p285
      %p287 = scmp.ne.s32.totalorder %s279, %s281
      %p288 = scmp.eq.s32.totalorder %s30, 7
      %p289 = por %p287, %p288
      %p290 = scmp.ne.s32.totalorder %s281, %s282
      %p291 = scmp.eq.s32.totalorder %s30, 0
      %p292 = por %p290, %p291
      %p293 = scmp.ne.s32.totalorder %s281, %s282
      %p294 = scmp.eq.s32.totalorder %s31, 7
      %p295 = por %p293, %p294
      %p297 = scmp.ne.s32.totalorder %s282, %s296
      %p298 = scmp.eq.s32.totalorder %s31, 0
      %p299 = por %p297, %p298
      %s300 = ssub.s32 %s32, %s44
      %p301 = scmp.eq.s32.totalorder %s300, 0
      %s303 = sadd.s32 %s302, 1
      %s304 = scalar_select %p301, %s302, %s303
      %p307 = pneg %p301
      %p308 = scmp.eq.s32.totalorder %s25, 7
      %p309 = por %p307, %p308
      %p310 = scmp.ne.s32.totalorder %s302, %s305
      %p311 = scmp.eq.s32.totalorder %s25, 0
      %p312 = por %p310, %p311
      %p313 = scmp.ne.s32.totalorder %s302, %s305
      %p314 = scmp.eq.s32.totalorder %s30, 7
      %p315 = por %p313, %p314
      %p316 = scmp.ne.s32.totalorder %s305, %s306
      %p317 = scmp.eq.s32.totalorder %s30, 0
      %p318 = por %p316, %p317
      %p319 = scmp.ne.s32.totalorder %s305, %s306
      %p320 = scmp.eq.s32.totalorder %s31, 7
      %p321 = por %p319, %p320
      %p323 = scmp.ne.s32.totalorder %s306, %s322
      %p324 = scmp.eq.s32.totalorder %s31, 0
      %p325 = por %p323, %p324
      %p326 = scmp.le.s32.totalorder 1, %s25
      %p327 = scmp.lt.s32.totalorder %s25, 9
      %p328 = pnand %p326, %p327
      %p329 = pneg %p328
      // Predicated region
      $region9: #{tpu_custom_call.1} parent=5 // pred_check
        _
      $region10: #{tpu_custom_call.1} parent=5 // pred_check_branch
        %331 = sbr.rel (%p328) target = $region12
      $region11: #{tpu_custom_call.1} parent=5 // pred_region
        %s332 = ssub.s32 %s25, 1
        // Predicated region
        $region13: #{tpu_custom_call.1} parent=11 // pred_check
          %p333 = pneg %p166
        $region14: #{tpu_custom_call.1} parent=11 // pred_check_branch
          %335 = sbr.rel (%p333) target = $region16
        $region15: #{tpu_custom_call.1} parent=11 // pred_region
          _
        $region16: #{tpu_custom_call.1} parent=11 // pred_fallthru
          _
        // Predicated region
        $region17: #{tpu_custom_call.1} parent=11 // pred_check
          %p336 = pneg %p187
        $region18: #{tpu_custom_call.1} parent=11 // pred_check_branch
          %338 = sbr.rel (%p336) target = $region20
        $region19: #{tpu_custom_call.1} parent=11 // pred_region
          _
        $region20: #{tpu_custom_call.1} parent=11 // pred_fallthru
          _
        // Predicated region
        $region21: #{tpu_custom_call.1} parent=11 // pred_check
          %p339 = pneg %p208
        $region22: #{tpu_custom_call.1} parent=11 // pred_check_branch
          %341 = sbr.rel (%p339) target = $region24
        $region23: #{tpu_custom_call.1} parent=11 // pred_region
          _
        $region24: #{tpu_custom_call.1} parent=11 // pred_fallthru
          _
        // Predicated region
        $region25: #{tpu_custom_call.1} parent=11 // pred_check
          %p342 = pneg %p229
        $region26: #{tpu_custom_call.1} parent=11 // pred_check_branch
          %344 = sbr.rel (%p342) target = $region28
        $region27: #{tpu_custom_call.1} parent=11 // pred_region
          _
        $region28: #{tpu_custom_call.1} parent=11 // pred_fallthru
          _
        // Predicated region
        $region29: #{tpu_custom_call.1} parent=11 // pred_check
          %p345 = pneg %p250
        $region30: #{tpu_custom_call.1} parent=11 // pred_check_branch
          %347 = sbr.rel (%p345) target = $region32
        $region31: #{tpu_custom_call.1} parent=11 // pred_region
          _
        $region32: #{tpu_custom_call.1} parent=11 // pred_fallthru
          _
        // Predicated region
        $region33: #{tpu_custom_call.1} parent=11 // pred_check
          %p348 = pneg %p271
        $region34: #{tpu_custom_call.1} parent=11 // pred_check_branch
          %350 = sbr.rel (%p348) target = $region36
        $region35: #{tpu_custom_call.1} parent=11 // pred_region
          _
        $region36: #{tpu_custom_call.1} parent=11 // pred_fallthru
          _
        // Predicated region
        $region37: #{tpu_custom_call.1} parent=11 // pred_check
          %p351 = pneg %p292
        $region38: #{tpu_custom_call.1} parent=11 // pred_check_branch
          %353 = sbr.rel (%p351) target = $region40
        $region39: #{tpu_custom_call.1} parent=11 // pred_region
          _
        $region40: #{tpu_custom_call.1} parent=11 // pred_fallthru
          _
      $region12: #{tpu_custom_call.1} parent=5 // pred_fallthru
        _
      %p354 = scmp.lt.s32.totalorder %s25, 8
      // Predicated region
      $region41: #{tpu_custom_call.1} parent=5 // pred_check
        %p355 = pneg %p354
      $region42: #{tpu_custom_call.1} parent=5 // pred_check_branch
        %357 = sbr.rel (%p355) target = $region44
      $region43: #{tpu_custom_call.1} parent=5 // pred_region
        // Predicated region
        $region45: #{tpu_custom_call.1} parent=43 // pred_check
          %p358 = pneg %p59
        $region46: #{tpu_custom_call.1} parent=43 // pred_check_branch
          %360 = sbr.rel (%p358) target = $region48
        $region47: #{tpu_custom_call.1} parent=43 // pred_region
          %s361 = sand.u32 %s49, 1
          %s362 = sand.u32 %s49, 1
          %s363 = smul.addr %s362, 32
          %s364 = scalar_lea.vmem [#allocation4], %s363
          %s365 = smul.u32 2, %s32
          %s366 = smul.u32 4, %s33
          %s367 = smul.addr %s365, 16
          %s368 = sadd.s32 %s366, %s367
          %s369 = smul.addr %s368, 4
          %s370 = scalar_lea.vmem %s0, %s369
          // Predicated region
          $region49: #{tpu_custom_call.1} parent=47 // pred_check
            _
          $region50: #{tpu_custom_call.1} parent=47 // pred_check_branch
            %372 = sbr.rel (0) target = $region52
          $region51: #{tpu_custom_call.1} parent=47 // pred_region
            // Predicated region
            $region53: #{tpu_custom_call.1} parent=51 // pred_check
              _
            $region54: #{tpu_custom_call.1} parent=51 // pred_check_branch
              %374 = sbr.rel (0) target = $region56
            $region55: #{tpu_custom_call.1} parent=51 // pred_region
              loop: start=0, step=1, limit=1
              $region57: #{tpu_custom_call.1} parent=55 // loop_pre_header
                _
              $region58: #{tpu_custom_call.1} parent=55 // loop_header
                %s376 = sphi 0, %s380
                %p377 = scmp.ge.s32.totalorder %s376, 1
                %s381 = sphi %s370, %s370
                %s382 = sphi %s364, %s364
              $region59: #{tpu_custom_call.1} parent=55 // loop_header_branch
                %379 = sbr.rel (%p377) target = $region63
              $region60: #{tpu_custom_call.1} parent=55 // loop_body
                %v383 = vld [vmem:[%s381] sm:$0xff]
                %384 = vst [vmem:[%s382] sm:$0xff] %v383
                %v385 = vld [vmem:[%s381 + $0x8] sm:$0xff]
                %386 = vst [vmem:[%s382 + $0x8] sm:$0xff] %v385
                %v387 = vld [vmem:[%s381 + $0x40] sm:$0xff]
                %388 = vst [vmem:[%s382 + $0x10] sm:$0xff] %v387
                %v389 = vld [vmem:[%s381 + $0x48] sm:$0xff]
                %390 = vst [vmem:[%s382 + $0x18] sm:$0xff] %v389
              $region61: #{tpu_custom_call.1} parent=55 // loop_footer
                %s380 = sadd.s32 1, %s376
              $region62: #{tpu_custom_call.1} parent=55 // loop_footer_branch
                %375 = sbr.rel target = $region58
              $region63: #{tpu_custom_call.1} parent=55 // loop_exit
                _
            $region56: #{tpu_custom_call.1} parent=51 // pred_fallthru
              _
            // Predicated region
            $region64: #{tpu_custom_call.1} parent=51 // pred_check
              _
            $region65: #{tpu_custom_call.1} parent=51 // pred_check_branch
              %392 = sbr.rel target = $region67
            $region66: #{tpu_custom_call.1} parent=51 // pred_region
              _
            $region67: #{tpu_custom_call.1} parent=51 // pred_fallthru
              _
          $region52: #{tpu_custom_call.1} parent=47 // pred_fallthru
            _
          %393 = vnop
        $region48: #{tpu_custom_call.1} parent=43 // pred_fallthru
          _
        // Predicated region
        $region68: #{tpu_custom_call.1} parent=43 // pred_check
          %p394 = pneg %p87
        $region69: #{tpu_custom_call.1} parent=43 // pred_check_branch
          %396 = sbr.rel (%p394) target = $region71
        $region70: #{tpu_custom_call.1} parent=43 // pred_region
          %s397 = sand.u32 %s77, 1
          %s398 = sand.u32 %s77, 1
          %s399 = smul.addr %s398, 32
          %s400 = scalar_lea.vmem [#allocation5], %s399
          %s401 = smul.u32 2, %s32
          %s402 = smul.u32 4, %s33
          %s403 = smul.addr %s401, 16
          %s404 = sadd.s32 %s402, %s403
          %s405 = smul.addr %s404, 4
          %s406 = scalar_lea.vmem %s1, %s405
          // Predicated region
          $region72: #{tpu_custom_call.1} parent=70 // pred_check
            _
          $region73: #{tpu_custom_call.1} parent=70 // pred_check_branch
            %408 = sbr.rel (0) target = $region75
          $region74: #{tpu_custom_call.1} parent=70 // pred_region
            // Predicated region
            $region76: #{tpu_custom_call.1} parent=74 // pred_check
              _
            $region77: #{tpu_custom_call.1} parent=74 // pred_check_branch
              %410 = sbr.rel (0) target = $region79
            $region78: #{tpu_custom_call.1} parent=74 // pred_region
              loop: start=0, step=1, limit=1
              $region80: #{tpu_custom_call.1} parent=78 // loop_pre_header
                _
              $region81: #{tpu_custom_call.1} parent=78 // loop_header
                %s412 = sphi 0, %s416
                %p413 = scmp.ge.s32.totalorder %s412, 1
                %s417 = sphi %s406, %s406
                %s418 = sphi %s400, %s400
              $region82: #{tpu_custom_call.1} parent=78 // loop_header_branch
                %415 = sbr.rel (%p413) target = $region86
              $region83: #{tpu_custom_call.1} parent=78 // loop_body
                %v419 = vld [vmem:[%s417] sm:$0xff]
                %420 = vst [vmem:[%s418] sm:$0xff] %v419
                %v421 = vld [vmem:[%s417 + $0x8] sm:$0xff]
                %422 = vst [vmem:[%s418 + $0x8] sm:$0xff] %v421
                %v423 = vld [vmem:[%s417 + $0x40] sm:$0xff]
                %424 = vst [vmem:[%s418 + $0x10] sm:$0xff] %v423
                %v425 = vld [vmem:[%s417 + $0x48] sm:$0xff]
                %426 = vst [vmem:[%s418 + $0x18] sm:$0xff] %v425
              $region84: #{tpu_custom_call.1} parent=78 // loop_footer
                %s416 = sadd.s32 1, %s412
              $region85: #{tpu_custom_call.1} parent=78 // loop_footer_branch
                %411 = sbr.rel target = $region81
              $region86: #{tpu_custom_call.1} parent=78 // loop_exit
                _
            $region79: #{tpu_custom_call.1} parent=74 // pred_fallthru
              _
            // Predicated region
            $region87: #{tpu_custom_call.1} parent=74 // pred_check
              _
            $region88: #{tpu_custom_call.1} parent=74 // pred_check_branch
              %428 = sbr.rel target = $region90
            $region89: #{tpu_custom_call.1} parent=74 // pred_region
              _
            $region90: #{tpu_custom_call.1} parent=74 // pred_fallthru
              _
          $region75: #{tpu_custom_call.1} parent=70 // pred_fallthru
            _
          %429 = vnop
        $region71: #{tpu_custom_call.1} parent=43 // pred_fallthru
          _
        // Predicated region
        $region91: #{tpu_custom_call.1} parent=43 // pred_check
          %p430 = pneg %p113
        $region92: #{tpu_custom_call.1} parent=43 // pred_check_branch
          %432 = sbr.rel (%p430) target = $region94
        $region93: #{tpu_custom_call.1} parent=43 // pred_region
          %s433 = sand.u32 %s103, 1
          %s434 = scalar_lea.sflag [#allocation7], %s433
          %s435 = sand.u32 %s103, 1
          %s436 = smul.addr %s435, 512
          %s437 = scalar_lea.vmem [#allocation6], %s436
          %s438 = smul.u32 64, %s33
          %440 = vsyncadd %s434, 0
          %s441 = smul.addr %s438, 2
          %s442 = smul.addr %s441, 4
          %s443 = scalar_lea.hbm %s2, %s442
          %s444 = sshll.u32 %s443, 4
          %s445 = int_to_ptr.hbm [resolvable:$true] %s444
          %s446 = sshll.u32 %s437, 4
          %s447 = int_to_ptr.vmem [resolvable:$true] %s446
          %452 = dma.hbm_to_vmem [thread:$0]  %s445, 8192, %s447, %s434, 128, 128, 8
        $region94: #{tpu_custom_call.1} parent=43 // pred_fallthru
          _
        // Predicated region
        $region95: #{tpu_custom_call.1} parent=43 // pred_check
          %p453 = pneg %p139
        $region96: #{tpu_custom_call.1} parent=43 // pred_check_branch
          %455 = sbr.rel (%p453) target = $region98
        $region97: #{tpu_custom_call.1} parent=43 // pred_region
          %s456 = sand.u32 %s129, 1
          %s457 = scalar_lea.sflag [#allocation9], %s456
          %s458 = sand.u32 %s129, 1
          %s459 = smul.addr %s458, 512
          %s460 = scalar_lea.vmem [#allocation8], %s459
          %s461 = smul.u32 64, %s33
          %463 = vsyncadd %s457, 0
          %s464 = smul.addr %s461, 2
          %s465 = smul.addr %s464, 4
          %s466 = scalar_lea.hbm %s3, %s465
          %s467 = sshll.u32 %s466, 4
          %s468 = int_to_ptr.hbm [resolvable:$true] %s467
          %s469 = sshll.u32 %s460, 4
          %s470 = int_to_ptr.vmem [resolvable:$true] %s469
          %475 = dma.hbm_to_vmem [thread:$0]  %s468, 8192, %s470, %s457, 128, 128, 8
        $region98: #{tpu_custom_call.1} parent=43 // pred_fallthru
          _
      $region44: #{tpu_custom_call.1} parent=5 // pred_fallthru
        _
      %p476 = scmp.le.s32.totalorder 1, %s25
      %p477 = scmp.lt.s32.totalorder %s25, 9
      %p478 = pnand %p476, %p477
      %p479 = pneg %p478
      // Predicated region
      $region99: #{tpu_custom_call.1} parent=5 // pred_check
        _
      $region100: #{tpu_custom_call.1} parent=5 // pred_check_branch
        %481 = sbr.rel (%p478) target = $region102
      $region101: #{tpu_custom_call.1} parent=5 // pred_region
        %s482 = ssub.s32 %s25, 1
        %s483 = sand.u32 %s52, 1
        %s484 = sand.u32 %s52, 1
        %s485 = smul.addr %s484, 32
        %s486 = scalar_lea.vmem [#allocation4], %s485
        // Predicated region
        $region103: #{tpu_custom_call.1} parent=101 // pred_check
          %p487 = pneg %p65
        $region104: #{tpu_custom_call.1} parent=101 // pred_check_branch
          %489 = sbr.rel (%p487) target = $region106
        $region105: #{tpu_custom_call.1} parent=101 // pred_region
          _
        $region106: #{tpu_custom_call.1} parent=101 // pred_fallthru
          _
        %s490 = sand.u32 %s80, 1
        %s491 = sand.u32 %s80, 1
        %s492 = smul.addr %s491, 32
        %s493 = scalar_lea.vmem [#allocation5], %s492
        // Predicated region
        $region107: #{tpu_custom_call.1} parent=101 // pred_check
          %p494 = pneg %p93
        $region108: #{tpu_custom_call.1} parent=101 // pred_check_branch
          %496 = sbr.rel (%p494) target = $region110
        $region109: #{tpu_custom_call.1} parent=101 // pred_region
          _
        $region110: #{tpu_custom_call.1} parent=101 // pred_fallthru
          _
        %s497 = sand.u32 %s106, 1
        %s498 = scalar_lea.sflag [#allocation7], %s497
        %s499 = sand.u32 %s106, 1
        %s500 = smul.addr %s499, 512
        %s501 = scalar_lea.vmem [#allocation6], %s500
        // Predicated region
        $region111: #{tpu_custom_call.1} parent=101 // pred_check
          %p502 = pneg %p119
        $region112: #{tpu_custom_call.1} parent=101 // pred_check_branch
          %504 = sbr.rel (%p502) target = $region114
        $region113: #{tpu_custom_call.1} parent=101 // pred_region
          %506 = dma.done %s498, 8192
        $region114: #{tpu_custom_call.1} parent=101 // pred_fallthru
          _
        %s507 = sand.u32 %s132, 1
        %s508 = scalar_lea.sflag [#allocation9], %s507
        %s509 = sand.u32 %s132, 1
        %s510 = smul.addr %s509, 512
        %s511 = scalar_lea.vmem [#allocation8], %s510
        // Predicated region
        $region115: #{tpu_custom_call.1} parent=101 // pred_check
          %p512 = pneg %p145
        $region116: #{tpu_custom_call.1} parent=101 // pred_check_branch
          %514 = sbr.rel (%p512) target = $region118
        $region117: #{tpu_custom_call.1} parent=101 // pred_region
          %516 = dma.done %s508, 8192
        $region118: #{tpu_custom_call.1} parent=101 // pred_fallthru
          _
        %s517 = sand.u32 %s52, 1
        %s518 = sand.u32 %s52, 1
        %s519 = smul.addr %s518, 32
        %s520 = scalar_lea.vmem [#allocation4], %s519
        %p521 = pneg %p65
        %p522 = pneg %p62
        %s523 = sand.u32 %s80, 1
        %s524 = sand.u32 %s80, 1
        %s525 = smul.addr %s524, 32
        %s526 = scalar_lea.vmem [#allocation5], %s525
        %p527 = pneg %p93
        %p528 = pneg %p90
        %s529 = sand.u32 %s106, 1
        %s530 = scalar_lea.sflag [#allocation7], %s529
        %s531 = sand.u32 %s106, 1
        %s532 = smul.addr %s531, 512
        %s533 = scalar_lea.vmem [#allocation6], %s532
        %p534 = pneg %p119
        %p535 = pneg %p116
        %s536 = sand.u32 %s132, 1
        %s537 = scalar_lea.sflag [#allocation9], %s536
        %s538 = sand.u32 %s132, 1
        %s539 = smul.addr %s538, 512
        %s540 = scalar_lea.vmem [#allocation8], %s539
        %p541 = pneg %p145
        %p542 = pneg %p142
        %p543 = pneg %p166
        %p544 = pneg %p163
        %p545 = pneg %p187
        %p546 = pneg %p184
        %p547 = pneg %p208
        %p548 = pneg %p205
        %p549 = pneg %p229
        %p550 = pneg %p226
        %p551 = pneg %p250
        %p552 = pneg %p247
        %p553 = pneg %p271
        %p554 = pneg %p268
        %p555 = pneg %p292
        %p556 = pneg %p289
        %p557 = pneg %p318
        %p558 = pneg %p315
        %s559 = smul.u32 2, %s34
        %p560 = scmp.lt.s32.totalorder %s559, 3
        %s561 = scalar_select %p560, %s559, 3
        %s562 = smul.addr %s561, 8
        %s563 = scalar_lea.vmem %s11, %s562
        %s564 = smul.u32 2, %s34
        %s565 = smul.u32 4, %s35
        %s566 = smul.u32 2, %s34
        %s567 = smul.u32 4, %s35
        %s568 = smul.u32 64, %s35
        %s569 = smul.u32 64, %s35
        %s570 = smul.u32 2, %s34
        %p571 = scmp.lt.s32.totalorder %s570, 3
        %s572 = scalar_select %p571, %s570, 3
        %s573 = smul.addr %s572, 8
        %s574 = scalar_lea.vmem %s11, %s573
        %s575 = smul.u32 2, %s34
        %p576 = scmp.eq.s32.totalorder %s35, 0
        // Predicated region
        $region119: #{tpu_custom_call.1} parent=101 // pred_check
          %p577 = pneg %p576
        $region120: #{tpu_custom_call.1} parent=101 // pred_check_branch
          %579 = sbr.rel (%p577) target = $region122
        $region121: #{tpu_custom_call.1} parent=101 // pred_region
          %580 = vst [vmem:[#allocation2] sm:$0xff] 0.0
          %581 = vst [vmem:[#allocation2 + $0x8] sm:$0xff] 0.0
          %582 = vst [vmem:[#allocation2 + $0x10] sm:$0xff] 0.0
          %583 = vst [vmem:[#allocation2 + $0x18] sm:$0xff] 0.0
          %584 = vst [vmem:[#allocation2 + $0x20] sm:$0xff] 0.0
          %585 = vst [vmem:[#allocation2 + $0x28] sm:$0xff] 0.0
          %586 = vst [vmem:[#allocation2 + $0x30] sm:$0xff] 0.0
          %587 = vst [vmem:[#allocation2 + $0x38] sm:$0xff] 0.0
        $region122: #{tpu_custom_call.1} parent=101 // pred_fallthru
          _
        %v588 = vld [vmem:[#allocation2] sm:$0xff]
        %v589 = vld [vmem:[#allocation2 + $0x8] sm:$0xff]
        %v590 = vld [vmem:[#allocation2 + $0x20] sm:$0xff]
        %v591 = vld [vmem:[#allocation2 + $0x28] sm:$0xff]
        %v592 = vld [vmem:[%s486] sm:$0xff]
        %v593 = vld [vmem:[%s486 + $0x8] sm:$0xff]
        %v594 = vld [vmem:[%s486 + $0x10] sm:$0xff]
        %v595 = vld [vmem:[%s486 + $0x18] sm:$0xff]
        %v596 = vld [vmem:[%s501] sm:$0xff]
        %v597 = vld [vmem:[%s501 + $0x8] sm:$0xff]
        %v598 = vld [vmem:[%s501 + $0x10] sm:$0xff]
        %v599 = vld [vmem:[%s501 + $0x18] sm:$0xff]
        %v600 = vld [vmem:[%s501 + $0x20] sm:$0xff]
        %v601 = vld [vmem:[%s501 + $0x28] sm:$0xff]
        %v602 = vld [vmem:[%s501 + $0x30] sm:$0xff]
        %v603 = vld [vmem:[%s501 + $0x38] sm:$0xff]
        %v604 = vld [vmem:[%s501 + $0x40] sm:$0xff]
        %v605 = vld [vmem:[%s501 + $0x48] sm:$0xff]
        %v606 = vld [vmem:[%s501 + $0x50] sm:$0xff]
        %v607 = vld [vmem:[%s501 + $0x58] sm:$0xff]
        %v608 = vld [vmem:[%s501 + $0x60] sm:$0xff]
        %v609 = vld [vmem:[%s501 + $0x68] sm:$0xff]
        %v610 = vld [vmem:[%s501 + $0x70] sm:$0xff]
        %v611 = vld [vmem:[%s501 + $0x78] sm:$0xff]
        %v612 = vld [vmem:[%s501 + $0x80] sm:$0xff]
        %v613 = vld [vmem:[%s501 + $0x88] sm:$0xff]
        %v614 = vld [vmem:[%s501 + $0x90] sm:$0xff]
        %v615 = vld [vmem:[%s501 + $0x98] sm:$0xff]
        %v616 = vld [vmem:[%s501 + $0xa0] sm:$0xff]
        %v617 = vld [vmem:[%s501 + $0xa8] sm:$0xff]
        %v618 = vld [vmem:[%s501 + $0xb0] sm:$0xff]
        %v619 = vld [vmem:[%s501 + $0xb8] sm:$0xff]
        %v620 = vld [vmem:[%s501 + $0xc0] sm:$0xff]
        %v621 = vld [vmem:[%s501 + $0xc8] sm:$0xff]
        %v622 = vld [vmem:[%s501 + $0xd0] sm:$0xff]
        %v623 = vld [vmem:[%s501 + $0xd8] sm:$0xff]
        %v624 = vld [vmem:[%s501 + $0xe0] sm:$0xff]
        %v625 = vld [vmem:[%s501 + $0xe8] sm:$0xff]
        %v626 = vld [vmem:[%s501 + $0xf0] sm:$0xff]
        %v627 = vld [vmem:[%s501 + $0xf8] sm:$0xff]
        %v628 = vld [vmem:[%s501 + $0x100] sm:$0xff]
        %v629 = vld [vmem:[%s501 + $0x108] sm:$0xff]
        %v630 = vld [vmem:[%s501 + $0x110] sm:$0xff]
        %v631 = vld [vmem:[%s501 + $0x118] sm:$0xff]
        %v632 = vld [vmem:[%s501 + $0x120] sm:$0xff]
        %v633 = vld [vmem:[%s501 + $0x128] sm:$0xff]
        %v634 = vld [vmem:[%s501 + $0x130] sm:$0xff]
        %v635 = vld [vmem:[%s501 + $0x138] sm:$0xff]
        %v636 = vld [vmem:[%s501 + $0x140] sm:$0xff]
        %v637 = vld [vmem:[%s501 + $0x148] sm:$0xff]
        %v638 = vld [vmem:[%s501 + $0x150] sm:$0xff]
        %v639 = vld [vmem:[%s501 + $0x158] sm:$0xff]
        %v640 = vld [vmem:[%s501 + $0x160] sm:$0xff]
        %v641 = vld [vmem:[%s501 + $0x168] sm:$0xff]
        %v642 = vld [vmem:[%s501 + $0x170] sm:$0xff]
        %v643 = vld [vmem:[%s501 + $0x178] sm:$0xff]
        %v644 = vld [vmem:[%s501 + $0x180] sm:$0xff]
        %v645 = vld [vmem:[%s501 + $0x188] sm:$0xff]
        %v646 = vld [vmem:[%s501 + $0x190] sm:$0xff]
        %v647 = vld [vmem:[%s501 + $0x198] sm:$0xff]
        %v648 = vld [vmem:[%s501 + $0x1a0] sm:$0xff]
        %v649 = vld [vmem:[%s501 + $0x1a8] sm:$0xff]
        %v650 = vld [vmem:[%s501 + $0x1b0] sm:$0xff]
        %v651 = vld [vmem:[%s501 + $0x1b8] sm:$0xff]
        %v652 = vld [vmem:[%s501 + $0x1c0] sm:$0xff]
        %v653 = vld [vmem:[%s501 + $0x1c8] sm:$0xff]
        %v654 = vld [vmem:[%s501 + $0x1d0] sm:$0xff]
        %v655 = vld [vmem:[%s501 + $0x1d8] sm:$0xff]
        %v656 = vld [vmem:[%s501 + $0x1e0] sm:$0xff]
        %v657 = vld [vmem:[%s501 + $0x1e8] sm:$0xff]
        %v658 = vld [vmem:[%s501 + $0x1f0] sm:$0xff]
        %v659 = vld [vmem:[%s501 + $0x1f8] sm:$0xff]
        %v664 = vunpack.c.l.b16 %v592
        %v665 = vunpack.c.h.b16 %v592
        %v666 = vunpack.c.l.b16 %v593
        %v667 = vunpack.c.h.b16 %v593
        %v668 = vunpack.c.l.b16 %v594
        %v669 = vunpack.c.h.b16 %v594
        %v670 = vunpack.c.l.b16 %v595
        %v671 = vunpack.c.h.b16 %v595
        %v672 = vpack.c.b16 %v668, %v664
        %v673 = vpack.c.b16 %v669, %v665
        %v674 = vpack.c.b16 %v670, %v666
        %v675 = vpack.c.b16 %v671, %v667
        %v744 = vunpack.c.l.b16 %v596
        %v745 = vunpack.c.h.b16 %v596
        %v746 = vunpack.c.l.b16 %v597
        %v747 = vunpack.c.h.b16 %v597
        %v748 = vunpack.c.l.b16 %v598
        %v749 = vunpack.c.h.b16 %v598
        %v750 = vunpack.c.l.b16 %v599
        %v751 = vunpack.c.h.b16 %v599
        %v752 = vunpack.c.l.b16 %v600
        %v753 = vunpack.c.h.b16 %v600
        %v754 = vunpack.c.l.b16 %v601
        %v755 = vunpack.c.h.b16 %v601
        %v756 = vunpack.c.l.b16 %v602
        %v757 = vunpack.c.h.b16 %v602
        %v758 = vunpack.c.l.b16 %v603
        %v759 = vunpack.c.h.b16 %v603
        %v760 = vunpack.c.l.b16 %v604
        %v761 = vunpack.c.h.b16 %v604
        %v762 = vunpack.c.l.b16 %v605
        %v763 = vunpack.c.h.b16 %v605
        %v764 = vunpack.c.l.b16 %v606
        %v765 = vunpack.c.h.b16 %v606
        %v766 = vunpack.c.l.b16 %v607
        %v767 = vunpack.c.h.b16 %v607
        %v768 = vunpack.c.l.b16 %v608
        %v769 = vunpack.c.h.b16 %v608
        %v770 = vunpack.c.l.b16 %v609
        %v771 = vunpack.c.h.b16 %v609
        %v772 = vunpack.c.l.b16 %v610
        %v773 = vunpack.c.h.b16 %v610
        %v774 = vunpack.c.l.b16 %v611
        %v775 = vunpack.c.h.b16 %v611
        %v776 = vunpack.c.l.b16 %v612
        %v777 = vunpack.c.h.b16 %v612
        %v778 = vunpack.c.l.b16 %v613
        %v779 = vunpack.c.h.b16 %v613
        %v780 = vunpack.c.l.b16 %v614
        %v781 = vunpack.c.h.b16 %v614
        %v782 = vunpack.c.l.b16 %v615
        %v783 = vunpack.c.h.b16 %v615
        %v784 = vunpack.c.l.b16 %v616
        %v785 = vunpack.c.h.b16 %v616
        %v786 = vunpack.c.l.b16 %v617
        %v787 = vunpack.c.h.b16 %v617
        %v788 = vunpack.c.l.b16 %v618
        %v789 = vunpack.c.h.b16 %v618
        %v790 = vunpack.c.l.b16 %v619
        %v791 = vunpack.c.h.b16 %v619
        %v792 = vunpack.c.l.b16 %v620
        %v793 = vunpack.c.h.b16 %v620
        %v794 = vunpack.c.l.b16 %v621
        %v795 = vunpack.c.h.b16 %v621
        %v796 = vunpack.c.l.b16 %v622
        %v797 = vunpack.c.h.b16 %v622
        %v798 = vunpack.c.l.b16 %v623
        %v799 = vunpack.c.h.b16 %v623
        %v800 = vunpack.c.l.b16 %v624
        %v801 = vunpack.c.h.b16 %v624
        %v802 = vunpack.c.l.b16 %v625
        %v803 = vunpack.c.h.b16 %v625
        %v804 = vunpack.c.l.b16 %v626
        %v805 = vunpack.c.h.b16 %v626
        %v806 = vunpack.c.l.b16 %v627
        %v807 = vunpack.c.h.b16 %v627
        %v808 = vunpack.c.l.b16 %v628
        %v809 = vunpack.c.h.b16 %v628
        %v810 = vunpack.c.l.b16 %v629
        %v811 = vunpack.c.h.b16 %v629
        %v812 = vunpack.c.l.b16 %v630
        %v813 = vunpack.c.h.b16 %v630
        %v814 = vunpack.c.l.b16 %v631
        %v815 = vunpack.c.h.b16 %v631
        %v816 = vunpack.c.l.b16 %v632
        %v817 = vunpack.c.h.b16 %v632
        %v818 = vunpack.c.l.b16 %v633
        %v819 = vunpack.c.h.b16 %v633
        %v820 = vunpack.c.l.b16 %v634
        %v821 = vunpack.c.h.b16 %v634
        %v822 = vunpack.c.l.b16 %v635
        %v823 = vunpack.c.h.b16 %v635
        %v824 = vunpack.c.l.b16 %v636
        %v825 = vunpack.c.h.b16 %v636
        %v826 = vunpack.c.l.b16 %v637
        %v827 = vunpack.c.h.b16 %v637
        %v828 = vunpack.c.l.b16 %v638
        %v829 = vunpack.c.h.b16 %v638
        %v830 = vunpack.c.l.b16 %v639
        %v831 = vunpack.c.h.b16 %v639
        %v832 = vunpack.c.l.b16 %v640
        %v833 = vunpack.c.h.b16 %v640
        %v834 = vunpack.c.l.b16 %v641
        %v835 = vunpack.c.h.b16 %v641
        %v836 = vunpack.c.l.b16 %v642
        %v837 = vunpack.c.h.b16 %v642
        %v838 = vunpack.c.l.b16 %v643
        %v839 = vunpack.c.h.b16 %v643
        %v840 = vunpack.c.l.b16 %v644
        %v841 = vunpack.c.h.b16 %v644
        %v842 = vunpack.c.l.b16 %v645
        %v843 = vunpack.c.h.b16 %v645
        %v844 = vunpack.c.l.b16 %v646
        %v845 = vunpack.c.h.b16 %v646
        %v846 = vunpack.c.l.b16 %v647
        %v847 = vunpack.c.h.b16 %v647
        %v848 = vunpack.c.l.b16 %v648
        %v849 = vunpack.c.h.b16 %v648
        %v850 = vunpack.c.l.b16 %v649
        %v851 = vunpack.c.h.b16 %v649
        %v852 = vunpack.c.l.b16 %v650
        %v853 = vunpack.c.h.b16 %v650
        %v854 = vunpack.c.l.b16 %v651
        %v855 = vunpack.c.h.b16 %v651
        %v856 = vunpack.c.l.b16 %v652
        %v857 = vunpack.c.h.b16 %v652
        %v858 = vunpack.c.l.b16 %v653
        %v859 = vunpack.c.h.b16 %v653
        %v860 = vunpack.c.l.b16 %v654
        %v861 = vunpack.c.h.b16 %v654
        %v862 = vunpack.c.l.b16 %v655
        %v863 = vunpack.c.h.b16 %v655
        %v864 = vunpack.c.l.b16 %v656
        %v865 = vunpack.c.h.b16 %v656
        %v866 = vunpack.c.l.b16 %v657
        %v867 = vunpack.c.h.b16 %v657
        %v868 = vunpack.c.l.b16 %v658
        %v869 = vunpack.c.h.b16 %v658
        %v870 = vunpack.c.l.b16 %v659
        %v871 = vunpack.c.h.b16 %v659
        %v872 = vpack.c.b16 %v746, %v744
        %v873 = vpack.c.b16 %v747, %v745
        %v874 = vpack.c.b16 %v750, %v748
        %v875 = vpack.c.b16 %v751, %v749
        %v876 = vpack.c.b16 %v754, %v752
        %v877 = vpack.c.b16 %v755, %v753
        %v878 = vpack.c.b16 %v758, %v756
        %v879 = vpack.c.b16 %v759, %v757
        %v880 = vpack.c.b16 %v762, %v760
        %v881 = vpack.c.b16 %v763, %v761
        %v882 = vpack.c.b16 %v766, %v764
        %v883 = vpack.c.b16 %v767, %v765
        %v884 = vpack.c.b16 %v770, %v768
        %v885 = vpack.c.b16 %v771, %v769
        %v886 = vpack.c.b16 %v774, %v772
        %v887 = vpack.c.b16 %v775, %v773
        %v888 = vpack.c.b16 %v778, %v776
        %v889 = vpack.c.b16 %v779, %v777
        %v890 = vpack.c.b16 %v782, %v780
        %v891 = vpack.c.b16 %v783, %v781
        %v892 = vpack.c.b16 %v786, %v784
        %v893 = vpack.c.b16 %v787, %v785
        %v894 = vpack.c.b16 %v790, %v788
        %v895 = vpack.c.b16 %v791, %v789
        %v896 = vpack.c.b16 %v794, %v792
        %v897 = vpack.c.b16 %v795, %v793
        %v898 = vpack.c.b16 %v798, %v796
        %v899 = vpack.c.b16 %v799, %v797
        %v900 = vpack.c.b16 %v802, %v800
        %v901 = vpack.c.b16 %v803, %v801
        %v902 = vpack.c.b16 %v806, %v804
        %v903 = vpack.c.b16 %v807, %v805
        %v904 = vpack.c.b16 %v810, %v808
        %v905 = vpack.c.b16 %v811, %v809
        %v906 = vpack.c.b16 %v814, %v812
        %v907 = vpack.c.b16 %v815, %v813
        %v908 = vpack.c.b16 %v818, %v816
        %v909 = vpack.c.b16 %v819, %v817
        %v910 = vpack.c.b16 %v822, %v820
        %v911 = vpack.c.b16 %v823, %v821
        %v912 = vpack.c.b16 %v826, %v824
        %v913 = vpack.c.b16 %v827, %v825
        %v914 = vpack.c.b16 %v830, %v828
        %v915 = vpack.c.b16 %v831, %v829
        %v916 = vpack.c.b16 %v834, %v832
        %v917 = vpack.c.b16 %v835, %v833
        %v918 = vpack.c.b16 %v838, %v836
        %v919 = vpack.c.b16 %v839, %v837
        %v920 = vpack.c.b16 %v842, %v840
        %v921 = vpack.c.b16 %v843, %v841
        %v922 = vpack.c.b16 %v846, %v844
        %v923 = vpack.c.b16 %v847, %v845
        %v924 = vpack.c.b16 %v850, %v848
        %v925 = vpack.c.b16 %v851, %v849
        %v926 = vpack.c.b16 %v854, %v852
        %v927 = vpack.c.b16 %v855, %v853
        %v928 = vpack.c.b16 %v858, %v856
        %v929 = vpack.c.b16 %v859, %v857
        %v930 = vpack.c.b16 %v862, %v860
        %v931 = vpack.c.b16 %v863, %v861
        %v932 = vpack.c.b16 %v866, %v864
        %v933 = vpack.c.b16 %v867, %v865
        %v934 = vpack.c.b16 %v870, %v868
        %v935 = vpack.c.b16 %v871, %v869
        %1000 = vmatpush.bf16.msra.mxu0 %v886
        %1001 = vmatpush.bf16.msra.mxu0 %v884
        %1002 = vmatpush.bf16.msra.mxu0 %v882
        %1003 = vmatpush.bf16.msra.mxu0 %v880
        %1004 = vmatpush.bf16.msra.mxu0 %v878
        %1005 = vmatpush.bf16.msra.mxu0 %v876
        %1006 = vmatpush.bf16.msra.mxu0 %v874
        %1007 = vmatpush.bf16.msra.mxu0 %v872
        %1008 = vmatmul.bf16.gmra.mxu0 %v672
        %v1009 = vpop.f32.mrf.mxu0
        %v1010 = vadd.f32 0.0, %v1009
        %v1011 = vpop.f32.mrf.mxu0
        %v1012 = vadd.f32 0.0, %v1011
        %1013 = vdwg.mxu0
        %1014 = vmatpush.bf16.msra.mxu0 %v902
        %1015 = vmatpush.bf16.msra.mxu0 %v900
        %1016 = vmatpush.bf16.msra.mxu0 %v898
        %1017 = vmatpush.bf16.msra.mxu0 %v896
        %1018 = vmatpush.bf16.msra.mxu0 %v894
        %1019 = vmatpush.bf16.msra.mxu0 %v892
        %1020 = vmatpush.bf16.msra.mxu0 %v890
        %1021 = vmatpush.bf16.msra.mxu0 %v888
        %1022 = vmatmul.bf16.gmra.mxu0 %v673
        %v1023 = vpop.f32.mrf.mxu0
        %v1024 = vadd.f32 %v1010, %v1023
        %v1025 = vpop.f32.mrf.mxu0
        %v1026 = vadd.f32 %v1012, %v1025
        %1027 = vdwg.mxu0
        %1028 = vmatpush.bf16.msra.mxu0 %v918
        %1029 = vmatpush.bf16.msra.mxu0 %v916
        %1030 = vmatpush.bf16.msra.mxu0 %v914
        %1031 = vmatpush.bf16.msra.mxu0 %v912
        %1032 = vmatpush.bf16.msra.mxu0 %v910
        %1033 = vmatpush.bf16.msra.mxu0 %v908
        %1034 = vmatpush.bf16.msra.mxu0 %v906
        %1035 = vmatpush.bf16.msra.mxu0 %v904
        %1036 = vmatmul.bf16.gmra.mxu0 %v674
        %v1037 = vpop.f32.mrf.mxu0
        %v1038 = vadd.f32 %v1024, %v1037
        %v1039 = vpop.f32.mrf.mxu0
        %v1040 = vadd.f32 %v1026, %v1039
        %1041 = vdwg.mxu0
        %1042 = vmatpush.bf16.msra.mxu0 %v934
        %1043 = vmatpush.bf16.msra.mxu0 %v932
        %1044 = vmatpush.bf16.msra.mxu0 %v930
        %1045 = vmatpush.bf16.msra.mxu0 %v928
        %1046 = vmatpush.bf16.msra.mxu0 %v926
        %1047 = vmatpush.bf16.msra.mxu0 %v924
        %1048 = vmatpush.bf16.msra.mxu0 %v922
        %1049 = vmatpush.bf16.msra.mxu0 %v920
        %1050 = vmatmul.bf16.gmra.mxu0 %v675
        %v1051 = vpop.f32.mrf.mxu0
        %v1052 = vadd.f32 %v1038, %v1051
        %v1053 = vpop.f32.mrf.mxu0
        %v1054 = vadd.f32 %v1040, %v1053
        %1055 = vdwg.mxu0
        %1056 = vmatpush.bf16.msra.mxu0 %v887
        %1057 = vmatpush.bf16.msra.mxu0 %v885
        %1058 = vmatpush.bf16.msra.mxu0 %v883
        %1059 = vmatpush.bf16.msra.mxu0 %v881
        %1060 = vmatpush.bf16.msra.mxu0 %v879
        %1061 = vmatpush.bf16.msra.mxu0 %v877
        %1062 = vmatpush.bf16.msra.mxu0 %v875
        %1063 = vmatpush.bf16.msra.mxu0 %v873
        %1064 = vmatmul.bf16.gmra.mxu0 %v672
        %v1065 = vpop.f32.mrf.mxu0
        %v1066 = vadd.f32 0.0, %v1065
        %v1067 = vpop.f32.mrf.mxu0
        %v1068 = vadd.f32 0.0, %v1067
        %1069 = vdwg.mxu0
        %1070 = vmatpush.bf16.msra.mxu0 %v903
        %1071 = vmatpush.bf16.msra.mxu0 %v901
        %1072 = vmatpush.bf16.msra.mxu0 %v899
        %1073 = vmatpush.bf16.msra.mxu0 %v897
        %1074 = vmatpush.bf16.msra.mxu0 %v895
        %1075 = vmatpush.bf16.msra.mxu0 %v893
        %1076 = vmatpush.bf16.msra.mxu0 %v891
        %1077 = vmatpush.bf16.msra.mxu0 %v889
        %1078 = vmatmul.bf16.gmra.mxu0 %v673
        %v1079 = vpop.f32.mrf.mxu0
        %v1080 = vadd.f32 %v1066, %v1079
        %v1081 = vpop.f32.mrf.mxu0
        %v1082 = vadd.f32 %v1068, %v1081
        %1083 = vdwg.mxu0
        %1084 = vmatpush.bf16.msra.mxu0 %v919
        %1085 = vmatpush.bf16.msra.mxu0 %v917
        %1086 = vmatpush.bf16.msra.mxu0 %v915
        %1087 = vmatpush.bf16.msra.mxu0 %v913
        %1088 = vmatpush.bf16.msra.mxu0 %v911
        %1089 = vmatpush.bf16.msra.mxu0 %v909
        %1090 = vmatpush.bf16.msra.mxu0 %v907
        %1091 = vmatpush.bf16.msra.mxu0 %v905
        %1092 = vmatmul.bf16.gmra.mxu0 %v674
        %v1093 = vpop.f32.mrf.mxu0
        %v1094 = vadd.f32 %v1080, %v1093
        %v1095 = vpop.f32.mrf.mxu0
        %v1096 = vadd.f32 %v1082, %v1095
        %1097 = vdwg.mxu0
        %1098 = vmatpush.bf16.msra.mxu0 %v935
        %1099 = vmatpush.bf16.msra.mxu0 %v933
        %1100 = vmatpush.bf16.msra.mxu0 %v931
        %1101 = vmatpush.bf16.msra.mxu0 %v929
        %1102 = vmatpush.bf16.msra.mxu0 %v927
        %1103 = vmatpush.bf16.msra.mxu0 %v925
        %1104 = vmatpush.bf16.msra.mxu0 %v923
        %1105 = vmatpush.bf16.msra.mxu0 %v921
        %1106 = vmatmul.bf16.gmra.mxu0 %v675
        %v1107 = vpop.f32.mrf.mxu0
        %v1108 = vadd.f32 %v1094, %v1107
        %v1109 = vpop.f32.mrf.mxu0
        %v1110 = vadd.f32 %v1096, %v1109
        %1111 = vdwg.mxu0
        %v1112 = vadd.f32 %v588, %v1052
        %v1113 = vadd.f32 %v589, %v1108
        %v1114 = vadd.f32 %v590, %v1054
        %v1115 = vadd.f32 %v591, %v1110
        %1116 = vst [vmem:[#allocation2] sm:$0xff] %v1112
        %1117 = vst [vmem:[#allocation2 + $0x8] sm:$0xff] %v1113
        %1118 = vst [vmem:[#allocation2 + $0x20] sm:$0xff] %v1114
        %1119 = vst [vmem:[#allocation2 + $0x28] sm:$0xff] %v1115
        %v1120 = vld [vmem:[#allocation2 + $0x10] sm:$0xff]
        %v1121 = vld [vmem:[#allocation2 + $0x18] sm:$0xff]
        %v1122 = vld [vmem:[#allocation2 + $0x30] sm:$0xff]
        %v1123 = vld [vmem:[#allocation2 + $0x38] sm:$0xff]
        %v1124 = vld [vmem:[%s493] sm:$0xff]
        %v1125 = vld [vmem:[%s493 + $0x8] sm:$0xff]
        %v1126 = vld [vmem:[%s493 + $0x10] sm:$0xff]
        %v1127 = vld [vmem:[%s493 + $0x18] sm:$0xff]
        %v1128 = vld [vmem:[%s511] sm:$0xff]
        %v1129 = vld [vmem:[%s511 + $0x8] sm:$0xff]
        %v1130 = vld [vmem:[%s511 + $0x10] sm:$0xff]
        %v1131 = vld [vmem:[%s511 + $0x18] sm:$0xff]
        %v1132 = vld [vmem:[%s511 + $0x20] sm:$0xff]
        %v1133 = vld [vmem:[%s511 + $0x28] sm:$0xff]
        %v1134 = vld [vmem:[%s511 + $0x30] sm:$0xff]
        %v1135 = vld [vmem:[%s511 + $0x38] sm:$0xff]
        %v1136 = vld [vmem:[%s511 + $0x40] sm:$0xff]
        %v1137 = vld [vmem:[%s511 + $0x48] sm:$0xff]
        %v1138 = vld [vmem:[%s511 + $0x50] sm:$0xff]
        %v1139 = vld [vmem:[%s511 + $0x58] sm:$0xff]
        %v1140 = vld [vmem:[%s511 + $0x60] sm:$0xff]
        %v1141 = vld [vmem:[%s511 + $0x68] sm:$0xff]
        %v1142 = vld [vmem:[%s511 + $0x70] sm:$0xff]
        %v1143 = vld [vmem:[%s511 + $0x78] sm:$0xff]
        %v1144 = vld [vmem:[%s511 + $0x80] sm:$0xff]
        %v1145 = vld [vmem:[%s511 + $0x88] sm:$0xff]
        %v1146 = vld [vmem:[%s511 + $0x90] sm:$0xff]
        %v1147 = vld [vmem:[%s511 + $0x98] sm:$0xff]
        %v1148 = vld [vmem:[%s511 + $0xa0] sm:$0xff]
        %v1149 = vld [vmem:[%s511 + $0xa8] sm:$0xff]
        %v1150 = vld [vmem:[%s511 + $0xb0] sm:$0xff]
        %v1151 = vld [vmem:[%s511 + $0xb8] sm:$0xff]
        %v1152 = vld [vmem:[%s511 + $0xc0] sm:$0xff]
        %v1153 = vld [vmem:[%s511 + $0xc8] sm:$0xff]
        %v1154 = vld [vmem:[%s511 + $0xd0] sm:$0xff]
        %v1155 = vld [vmem:[%s511 + $0xd8] sm:$0xff]
        %v1156 = vld [vmem:[%s511 + $0xe0] sm:$0xff]
        %v1157 = vld [vmem:[%s511 + $0xe8] sm:$0xff]
        %v1158 = vld [vmem:[%s511 + $0xf0] sm:$0xff]
        %v1159 = vld [vmem:[%s511 + $0xf8] sm:$0xff]
        %v1160 = vld [vmem:[%s511 + $0x100] sm:$0xff]
        %v1161 = vld [vmem:[%s511 + $0x108] sm:$0xff]
        %v1162 = vld [vmem:[%s511 + $0x110] sm:$0xff]
        %v1163 = vld [vmem:[%s511 + $0x118] sm:$0xff]
        %v1164 = vld [vmem:[%s511 + $0x120] sm:$0xff]
        %v1165 = vld [vmem:[%s511 + $0x128] sm:$0xff]
        %v1166 = vld [vmem:[%s511 + $0x130] sm:$0xff]
        %v1167 = vld [vmem:[%s511 + $0x138] sm:$0xff]
        %v1168 = vld [vmem:[%s511 + $0x140] sm:$0xff]
        %v1169 = vld [vmem:[%s511 + $0x148] sm:$0xff]
        %v1170 = vld [vmem:[%s511 + $0x150] sm:$0xff]
        %v1171 = vld [vmem:[%s511 + $0x158] sm:$0xff]
        %v1172 = vld [vmem:[%s511 + $0x160] sm:$0xff]
        %v1173 = vld [vmem:[%s511 + $0x168] sm:$0xff]
        %v1174 = vld [vmem:[%s511 + $0x170] sm:$0xff]
        %v1175 = vld [vmem:[%s511 + $0x178] sm:$0xff]
        %v1176 = vld [vmem:[%s511 + $0x180] sm:$0xff]
        %v1177 = vld [vmem:[%s511 + $0x188] sm:$0xff]
        %v1178 = vld [vmem:[%s511 + $0x190] sm:$0xff]
        %v1179 = vld [vmem:[%s511 + $0x198] sm:$0xff]
        %v1180 = vld [vmem:[%s511 + $0x1a0] sm:$0xff]
        %v1181 = vld [vmem:[%s511 + $0x1a8] sm:$0xff]
        %v1182 = vld [vmem:[%s511 + $0x1b0] sm:$0xff]
        %v1183 = vld [vmem:[%s511 + $0x1b8] sm:$0xff]
        %v1184 = vld [vmem:[%s511 + $0x1c0] sm:$0xff]
        %v1185 = vld [vmem:[%s511 + $0x1c8] sm:$0xff]
        %v1186 = vld [vmem:[%s511 + $0x1d0] sm:$0xff]
        %v1187 = vld [vmem:[%s511 + $0x1d8] sm:$0xff]
        %v1188 = vld [vmem:[%s511 + $0x1e0] sm:$0xff]
        %v1189 = vld [vmem:[%s511 + $0x1e8] sm:$0xff]
        %v1190 = vld [vmem:[%s511 + $0x1f0] sm:$0xff]
        %v1191 = vld [vmem:[%s511 + $0x1f8] sm:$0xff]
        %v1196 = vunpack.c.l.b16 %v1124
        %v1197 = vunpack.c.h.b16 %v1124
        %v1198 = vunpack.c.l.b16 %v1125
        %v1199 = vunpack.c.h.b16 %v1125
        %v1200 = vunpack.c.l.b16 %v1126
        %v1201 = vunpack.c.h.b16 %v1126
        %v1202 = vunpack.c.l.b16 %v1127
        %v1203 = vunpack.c.h.b16 %v1127
        %v1204 = vpack.c.b16 %v1200, %v1196
        %v1205 = vpack.c.b16 %v1201, %v1197
        %v1206 = vpack.c.b16 %v1202, %v1198
        %v1207 = vpack.c.b16 %v1203, %v1199
        %v1276 = vunpack.c.l.b16 %v1128
        %v1277 = vunpack.c.h.b16 %v1128
        %v1278 = vunpack.c.l.b16 %v1129
        %v1279 = vunpack.c.h.b16 %v1129
        %v1280 = vunpack.c.l.b16 %v1130
        %v1281 = vunpack.c.h.b16 %v1130
        %v1282 = vunpack.c.l.b16 %v1131
        %v1283 = vunpack.c.h.b16 %v1131
        %v1284 = vunpack.c.l.b16 %v1132
        %v1285 = vunpack.c.h.b16 %v1132
        %v1286 = vunpack.c.l.b16 %v1133
        %v1287 = vunpack.c.h.b16 %v1133
        %v1288 = vunpack.c.l.b16 %v1134
        %v1289 = vunpack.c.h.b16 %v1134
        %v1290 = vunpack.c.l.b16 %v1135
        %v1291 = vunpack.c.h.b16 %v1135
        %v1292 = vunpack.c.l.b16 %v1136
        %v1293 = vunpack.c.h.b16 %v1136
        %v1294 = vunpack.c.l.b16 %v1137
        %v1295 = vunpack.c.h.b16 %v1137
        %v1296 = vunpack.c.l.b16 %v1138
        %v1297 = vunpack.c.h.b16 %v1138
        %v1298 = vunpack.c.l.b16 %v1139
        %v1299 = vunpack.c.h.b16 %v1139
        %v1300 = vunpack.c.l.b16 %v1140
        %v1301 = vunpack.c.h.b16 %v1140
        %v1302 = vunpack.c.l.b16 %v1141
        %v1303 = vunpack.c.h.b16 %v1141
        %v1304 = vunpack.c.l.b16 %v1142
        %v1305 = vunpack.c.h.b16 %v1142
        %v1306 = vunpack.c.l.b16 %v1143
        %v1307 = vunpack.c.h.b16 %v1143
        %v1308 = vunpack.c.l.b16 %v1144
        %v1309 = vunpack.c.h.b16 %v1144
        %v1310 = vunpack.c.l.b16 %v1145
        %v1311 = vunpack.c.h.b16 %v1145
        %v1312 = vunpack.c.l.b16 %v1146
        %v1313 = vunpack.c.h.b16 %v1146
        %v1314 = vunpack.c.l.b16 %v1147
        %v1315 = vunpack.c.h.b16 %v1147
        %v1316 = vunpack.c.l.b16 %v1148
        %v1317 = vunpack.c.h.b16 %v1148
        %v1318 = vunpack.c.l.b16 %v1149
        %v1319 = vunpack.c.h.b16 %v1149
        %v1320 = vunpack.c.l.b16 %v1150
        %v1321 = vunpack.c.h.b16 %v1150
        %v1322 = vunpack.c.l.b16 %v1151
        %v1323 = vunpack.c.h.b16 %v1151
        %v1324 = vunpack.c.l.b16 %v1152
        %v1325 = vunpack.c.h.b16 %v1152
        %v1326 = vunpack.c.l.b16 %v1153
        %v1327 = vunpack.c.h.b16 %v1153
        %v1328 = vunpack.c.l.b16 %v1154
        %v1329 = vunpack.c.h.b16 %v1154
        %v1330 = vunpack.c.l.b16 %v1155
        %v1331 = vunpack.c.h.b16 %v1155
        %v1332 = vunpack.c.l.b16 %v1156
        %v1333 = vunpack.c.h.b16 %v1156
        %v1334 = vunpack.c.l.b16 %v1157
        %v1335 = vunpack.c.h.b16 %v1157
        %v1336 = vunpack.c.l.b16 %v1158
        %v1337 = vunpack.c.h.b16 %v1158
        %v1338 = vunpack.c.l.b16 %v1159
        %v1339 = vunpack.c.h.b16 %v1159
        %v1340 = vunpack.c.l.b16 %v1160
        %v1341 = vunpack.c.h.b16 %v1160
        %v1342 = vunpack.c.l.b16 %v1161
        %v1343 = vunpack.c.h.b16 %v1161
        %v1344 = vunpack.c.l.b16 %v1162
        %v1345 = vunpack.c.h.b16 %v1162
        %v1346 = vunpack.c.l.b16 %v1163
        %v1347 = vunpack.c.h.b16 %v1163
        %v1348 = vunpack.c.l.b16 %v1164
        %v1349 = vunpack.c.h.b16 %v1164
        %v1350 = vunpack.c.l.b16 %v1165
        %v1351 = vunpack.c.h.b16 %v1165
        %v1352 = vunpack.c.l.b16 %v1166
        %v1353 = vunpack.c.h.b16 %v1166
        %v1354 = vunpack.c.l.b16 %v1167
        %v1355 = vunpack.c.h.b16 %v1167
        %v1356 = vunpack.c.l.b16 %v1168
        %v1357 = vunpack.c.h.b16 %v1168
        %v1358 = vunpack.c.l.b16 %v1169
        %v1359 = vunpack.c.h.b16 %v1169
        %v1360 = vunpack.c.l.b16 %v1170
        %v1361 = vunpack.c.h.b16 %v1170
        %v1362 = vunpack.c.l.b16 %v1171
        %v1363 = vunpack.c.h.b16 %v1171
        %v1364 = vunpack.c.l.b16 %v1172
        %v1365 = vunpack.c.h.b16 %v1172
        %v1366 = vunpack.c.l.b16 %v1173
        %v1367 = vunpack.c.h.b16 %v1173
        %v1368 = vunpack.c.l.b16 %v1174
        %v1369 = vunpack.c.h.b16 %v1174
        %v1370 = vunpack.c.l.b16 %v1175
        %v1371 = vunpack.c.h.b16 %v1175
        %v1372 = vunpack.c.l.b16 %v1176
        %v1373 = vunpack.c.h.b16 %v1176
        %v1374 = vunpack.c.l.b16 %v1177
        %v1375 = vunpack.c.h.b16 %v1177
        %v1376 = vunpack.c.l.b16 %v1178
        %v1377 = vunpack.c.h.b16 %v1178
        %v1378 = vunpack.c.l.b16 %v1179
        %v1379 = vunpack.c.h.b16 %v1179
        %v1380 = vunpack.c.l.b16 %v1180
        %v1381 = vunpack.c.h.b16 %v1180
        %v1382 = vunpack.c.l.b16 %v1181
        %v1383 = vunpack.c.h.b16 %v1181
        %v1384 = vunpack.c.l.b16 %v1182
        %v1385 = vunpack.c.h.b16 %v1182
        %v1386 = vunpack.c.l.b16 %v1183
        %v1387 = vunpack.c.h.b16 %v1183
        %v1388 = vunpack.c.l.b16 %v1184
        %v1389 = vunpack.c.h.b16 %v1184
        %v1390 = vunpack.c.l.b16 %v1185
        %v1391 = vunpack.c.h.b16 %v1185
        %v1392 = vunpack.c.l.b16 %v1186
        %v1393 = vunpack.c.h.b16 %v1186
        %v1394 = vunpack.c.l.b16 %v1187
        %v1395 = vunpack.c.h.b16 %v1187
        %v1396 = vunpack.c.l.b16 %v1188
        %v1397 = vunpack.c.h.b16 %v1188
        %v1398 = vunpack.c.l.b16 %v1189
        %v1399 = vunpack.c.h.b16 %v1189
        %v1400 = vunpack.c.l.b16 %v1190
        %v1401 = vunpack.c.h.b16 %v1190
        %v1402 = vunpack.c.l.b16 %v1191
        %v1403 = vunpack.c.h.b16 %v1191
        %v1404 = vpack.c.b16 %v1278, %v1276
        %v1405 = vpack.c.b16 %v1279, %v1277
        %v1406 = vpack.c.b16 %v1282, %v1280
        %v1407 = vpack.c.b16 %v1283, %v1281
        %v1408 = vpack.c.b16 %v1286, %v1284
        %v1409 = vpack.c.b16 %v1287, %v1285
        %v1410 = vpack.c.b16 %v1290, %v1288
        %v1411 = vpack.c.b16 %v1291, %v1289
        %v1412 = vpack.c.b16 %v1294, %v1292
        %v1413 = vpack.c.b16 %v1295, %v1293
        %v1414 = vpack.c.b16 %v1298, %v1296
        %v1415 = vpack.c.b16 %v1299, %v1297
        %v1416 = vpack.c.b16 %v1302, %v1300
        %v1417 = vpack.c.b16 %v1303, %v1301
        %v1418 = vpack.c.b16 %v1306, %v1304
        %v1419 = vpack.c.b16 %v1307, %v1305
        %v1420 = vpack.c.b16 %v1310, %v1308
        %v1421 = vpack.c.b16 %v1311, %v1309
        %v1422 = vpack.c.b16 %v1314, %v1312
        %v1423 = vpack.c.b16 %v1315, %v1313
        %v1424 = vpack.c.b16 %v1318, %v1316
        %v1425 = vpack.c.b16 %v1319, %v1317
        %v1426 = vpack.c.b16 %v1322, %v1320
        %v1427 = vpack.c.b16 %v1323, %v1321
        %v1428 = vpack.c.b16 %v1326, %v1324
        %v1429 = vpack.c.b16 %v1327, %v1325
        %v1430 = vpack.c.b16 %v1330, %v1328
        %v1431 = vpack.c.b16 %v1331, %v1329
        %v1432 = vpack.c.b16 %v1334, %v1332
        %v1433 = vpack.c.b16 %v1335, %v1333
        %v1434 = vpack.c.b16 %v1338, %v1336
        %v1435 = vpack.c.b16 %v1339, %v1337
        %v1436 = vpack.c.b16 %v1342, %v1340
        %v1437 = vpack.c.b16 %v1343, %v1341
        %v1438 = vpack.c.b16 %v1346, %v1344
        %v1439 = vpack.c.b16 %v1347, %v1345
        %v1440 = vpack.c.b16 %v1350, %v1348
        %v1441 = vpack.c.b16 %v1351, %v1349
        %v1442 = vpack.c.b16 %v1354, %v1352
        %v1443 = vpack.c.b16 %v1355, %v1353
        %v1444 = vpack.c.b16 %v1358, %v1356
        %v1445 = vpack.c.b16 %v1359, %v1357
        %v1446 = vpack.c.b16 %v1362, %v1360
        %v1447 = vpack.c.b16 %v1363, %v1361
        %v1448 = vpack.c.b16 %v1366, %v1364
        %v1449 = vpack.c.b16 %v1367, %v1365
        %v1450 = vpack.c.b16 %v1370, %v1368
        %v1451 = vpack.c.b16 %v1371, %v1369
        %v1452 = vpack.c.b16 %v1374, %v1372
        %v1453 = vpack.c.b16 %v1375, %v1373
        %v1454 = vpack.c.b16 %v1378, %v1376
        %v1455 = vpack.c.b16 %v1379, %v1377
        %v1456 = vpack.c.b16 %v1382, %v1380
        %v1457 = vpack.c.b16 %v1383, %v1381
        %v1458 = vpack.c.b16 %v1386, %v1384
        %v1459 = vpack.c.b16 %v1387, %v1385
        %v1460 = vpack.c.b16 %v1390, %v1388
        %v1461 = vpack.c.b16 %v1391, %v1389
        %v1462 = vpack.c.b16 %v1394, %v1392
        %v1463 = vpack.c.b16 %v1395, %v1393
        %v1464 = vpack.c.b16 %v1398, %v1396
        %v1465 = vpack.c.b16 %v1399, %v1397
        %v1466 = vpack.c.b16 %v1402, %v1400
        %v1467 = vpack.c.b16 %v1403, %v1401
        %1532 = vmatpush.bf16.msra.mxu0 %v1418
        %1533 = vmatpush.bf16.msra.mxu0 %v1416
        %1534 = vmatpush.bf16.msra.mxu0 %v1414
        %1535 = vmatpush.bf16.msra.mxu0 %v1412
        %1536 = vmatpush.bf16.msra.mxu0 %v1410
        %1537 = vmatpush.bf16.msra.mxu0 %v1408
        %1538 = vmatpush.bf16.msra.mxu0 %v1406
        %1539 = vmatpush.bf16.msra.mxu0 %v1404
        %1540 = vmatmul.bf16.gmra.mxu0 %v1204
        %v1541 = vpop.f32.mrf.mxu0
        %v1542 = vadd.f32 0.0, %v1541
        %v1543 = vpop.f32.mrf.mxu0
        %v1544 = vadd.f32 0.0, %v1543
        %1545 = vdwg.mxu0
        %1546 = vmatpush.bf16.msra.mxu0 %v1434
        %1547 = vmatpush.bf16.msra.mxu0 %v1432
        %1548 = vmatpush.bf16.msra.mxu0 %v1430
        %1549 = vmatpush.bf16.msra.mxu0 %v1428
        %1550 = vmatpush.bf16.msra.mxu0 %v1426
        %1551 = vmatpush.bf16.msra.mxu0 %v1424
        %1552 = vmatpush.bf16.msra.mxu0 %v1422
        %1553 = vmatpush.bf16.msra.mxu0 %v1420
        %1554 = vmatmul.bf16.gmra.mxu0 %v1205
        %v1555 = vpop.f32.mrf.mxu0
        %v1556 = vadd.f32 %v1542, %v1555
        %v1557 = vpop.f32.mrf.mxu0
        %v1558 = vadd.f32 %v1544, %v1557
        %1559 = vdwg.mxu0
        %1560 = vmatpush.bf16.msra.mxu0 %v1450
        %1561 = vmatpush.bf16.msra.mxu0 %v1448
        %1562 = vmatpush.bf16.msra.mxu0 %v1446
        %1563 = vmatpush.bf16.msra.mxu0 %v1444
        %1564 = vmatpush.bf16.msra.mxu0 %v1442
        %1565 = vmatpush.bf16.msra.mxu0 %v1440
        %1566 = vmatpush.bf16.msra.mxu0 %v1438
        %1567 = vmatpush.bf16.msra.mxu0 %v1436
        %1568 = vmatmul.bf16.gmra.mxu0 %v1206
        %v1569 = vpop.f32.mrf.mxu0
        %v1570 = vadd.f32 %v1556, %v1569
        %v1571 = vpop.f32.mrf.mxu0
        %v1572 = vadd.f32 %v1558, %v1571
        %1573 = vdwg.mxu0
        %1574 = vmatpush.bf16.msra.mxu0 %v1466
        %1575 = vmatpush.bf16.msra.mxu0 %v1464
        %1576 = vmatpush.bf16.msra.mxu0 %v1462
        %1577 = vmatpush.bf16.msra.mxu0 %v1460
        %1578 = vmatpush.bf16.msra.mxu0 %v1458
        %1579 = vmatpush.bf16.msra.mxu0 %v1456
        %1580 = vmatpush.bf16.msra.mxu0 %v1454
        %1581 = vmatpush.bf16.msra.mxu0 %v1452
        %1582 = vmatmul.bf16.gmra.mxu0 %v1207
        %v1583 = vpop.f32.mrf.mxu0
        %v1584 = vadd.f32 %v1570, %v1583
        %v1585 = vpop.f32.mrf.mxu0
        %v1586 = vadd.f32 %v1572, %v1585
        %1587 = vdwg.mxu0
        %1588 = vmatpush.bf16.msra.mxu0 %v1419
        %1589 = vmatpush.bf16.msra.mxu0 %v1417
        %1590 = vmatpush.bf16.msra.mxu0 %v1415
        %1591 = vmatpush.bf16.msra.mxu0 %v1413
        %1592 = vmatpush.bf16.msra.mxu0 %v1411
        %1593 = vmatpush.bf16.msra.mxu0 %v1409
        %1594 = vmatpush.bf16.msra.mxu0 %v1407
        %1595 = vmatpush.bf16.msra.mxu0 %v1405
        %1596 = vmatmul.bf16.gmra.mxu0 %v1204
        %v1597 = vpop.f32.mrf.mxu0
        %v1598 = vadd.f32 0.0, %v1597
        %v1599 = vpop.f32.mrf.mxu0
        %v1600 = vadd.f32 0.0, %v1599
        %1601 = vdwg.mxu0
        %1602 = vmatpush.bf16.msra.mxu0 %v1435
        %1603 = vmatpush.bf16.msra.mxu0 %v1433
        %1604 = vmatpush.bf16.msra.mxu0 %v1431
        %1605 = vmatpush.bf16.msra.mxu0 %v1429
        %1606 = vmatpush.bf16.msra.mxu0 %v1427
        %1607 = vmatpush.bf16.msra.mxu0 %v1425
        %1608 = vmatpush.bf16.msra.mxu0 %v1423
        %1609 = vmatpush.bf16.msra.mxu0 %v1421
        %1610 = vmatmul.bf16.gmra.mxu0 %v1205
        %v1611 = vpop.f32.mrf.mxu0
        %v1612 = vadd.f32 %v1598, %v1611
        %v1613 = vpop.f32.mrf.mxu0
        %v1614 = vadd.f32 %v1600, %v1613
        %1615 = vdwg.mxu0
        %1616 = vmatpush.bf16.msra.mxu0 %v1451
        %1617 = vmatpush.bf16.msra.mxu0 %v1449
        %1618 = vmatpush.bf16.msra.mxu0 %v1447
        %1619 = vmatpush.bf16.msra.mxu0 %v1445
        %1620 = vmatpush.bf16.msra.mxu0 %v1443
        %1621 = vmatpush.bf16.msra.mxu0 %v1441
        %1622 = vmatpush.bf16.msra.mxu0 %v1439
        %1623 = vmatpush.bf16.msra.mxu0 %v1437
        %1624 = vmatmul.bf16.gmra.mxu0 %v1206
        %v1625 = vpop.f32.mrf.mxu0
        %v1626 = vadd.f32 %v1612, %v1625
        %v1627 = vpop.f32.mrf.mxu0
        %v1628 = vadd.f32 %v1614, %v1627
        %1629 = vdwg.mxu0
        %1630 = vmatpush.bf16.msra.mxu0 %v1467
        %1631 = vmatpush.bf16.msra.mxu0 %v1465
        %1632 = vmatpush.bf16.msra.mxu0 %v1463
        %1633 = vmatpush.bf16.msra.mxu0 %v1461
        %1634 = vmatpush.bf16.msra.mxu0 %v1459
        %1635 = vmatpush.bf16.msra.mxu0 %v1457
        %1636 = vmatpush.bf16.msra.mxu0 %v1455
        %1637 = vmatpush.bf16.msra.mxu0 %v1453
        %1638 = vmatmul.bf16.gmra.mxu0 %v1207
        %v1639 = vpop.f32.mrf.mxu0
        %v1640 = vadd.f32 %v1626, %v1639
        %v1641 = vpop.f32.mrf.mxu0
        %v1642 = vadd.f32 %v1628, %v1641
        %1643 = vdwg.mxu0
        %v1644 = vadd.f32 %v1120, %v1584
        %v1645 = vadd.f32 %v1121, %v1640
        %v1646 = vadd.f32 %v1122, %v1586
        %v1647 = vadd.f32 %v1123, %v1642
        %1648 = vst [vmem:[#allocation2 + $0x10] sm:$0xff] %v1644
        %1649 = vst [vmem:[#allocation2 + $0x18] sm:$0xff] %v1645
        %1650 = vst [vmem:[#allocation2 + $0x30] sm:$0xff] %v1646
        %1651 = vst [vmem:[#allocation2 + $0x38] sm:$0xff] %v1647
        %p1652 = scmp.eq.s32.totalorder %s35, 3
        // Predicated region
        $region123: #{tpu_custom_call.1} parent=101 // pred_check
          %p1653 = pneg %p1652
        $region124: #{tpu_custom_call.1} parent=101 // pred_check_branch
          %1655 = sbr.rel (%p1653) target = $region126
        $region125: #{tpu_custom_call.1} parent=101 // pred_region
          %v1656 = vld [vmem:[#allocation2] sm:$0xff]
          %v1657 = vld [vmem:[#allocation2 + $0x8] sm:$0xff]
          %v1658 = vld [vmem:[#allocation2 + $0x10] sm:$0xff]
          %v1659 = vld [vmem:[#allocation2 + $0x18] sm:$0xff]
          %v1660 = vld [vmem:[#allocation2 + $0x20] sm:$0xff]
          %v1661 = vld [vmem:[#allocation2 + $0x28] sm:$0xff]
          %v1662 = vld [vmem:[#allocation2 + $0x30] sm:$0xff]
          %v1663 = vld [vmem:[#allocation2 + $0x38] sm:$0xff]
          %v1664 = vld [vmem:[%s4] sm:$0xf]
          %v1666 = vperm.slane %v1664, 0
          %v1667 = vperm.slane %v1664, 1
          %v1668 = vperm.slane %v1664, 2
          %v1669 = vperm.slane %v1664, 3
          %v1674 = vadd.f32 %v1656, %v1666
          %v1675 = vadd.f32 %v1657, %v1667
          %v1676 = vadd.f32 %v1658, %v1668
          %v1677 = vadd.f32 %v1659, %v1669
          %v1678 = vadd.f32 %v1660, %v1666
          %v1679 = vadd.f32 %v1661, %v1667
          %v1680 = vadd.f32 %v1662, %v1668
          %v1681 = vadd.f32 %v1663, %v1669
          %v1682 = vmax.f32 %v1674, 0.0
          %v1683 = vmax.f32 %v1675, 0.0
          %v1684 = vmax.f32 %v1676, 0.0
          %v1685 = vmax.f32 %v1677, 0.0
          %v1686 = vmax.f32 %v1678, 0.0
          %v1687 = vmax.f32 %v1679, 0.0
          %v1688 = vmax.f32 %v1680, 0.0
          %v1689 = vmax.f32 %v1681, 0.0
          %v1690 = vmin.f32 %v1682, 1.0
          %v1691 = vmin.f32 %v1683, 1.0
          %v1692 = vmin.f32 %v1684, 1.0
          %v1693 = vmin.f32 %v1685, 1.0
          %v1694 = vmin.f32 %v1686, 1.0
          %v1695 = vmin.f32 %v1687, 1.0
          %v1696 = vmin.f32 %v1688, 1.0
          %v1697 = vmin.f32 %v1689, 1.0
          %v1698 = vld [vmem:[%s5] sm:$0xff]
          %v1699 = vld [vmem:[%s5 + $0x8] sm:$0xff]
          %v1700 = vld [vmem:[%s5 + $0x10] sm:$0xff]
          %v1701 = vld [vmem:[%s5 + $0x18] sm:$0xff]
          %v1702 = vld [vmem:[%s5 + $0x20] sm:$0xff]
          %v1703 = vld [vmem:[%s5 + $0x28] sm:$0xff]
          %v1704 = vld [vmem:[%s5 + $0x30] sm:$0xff]
          %v1705 = vld [vmem:[%s5 + $0x38] sm:$0xff]
          %v1706 = vld [vmem:[%s5 + $0x40] sm:$0xff]
          %v1707 = vld [vmem:[%s5 + $0x48] sm:$0xff]
          %v1708 = vld [vmem:[%s5 + $0x50] sm:$0xff]
          %v1709 = vld [vmem:[%s5 + $0x58] sm:$0xff]
          %v1710 = vld [vmem:[%s5 + $0x60] sm:$0xff]
          %v1711 = vld [vmem:[%s5 + $0x68] sm:$0xff]
          %v1712 = vld [vmem:[%s5 + $0x70] sm:$0xff]
          %v1713 = vld [vmem:[%s5 + $0x78] sm:$0xff]
          %v1714 = vld [vmem:[%s5 + $0x80] sm:$0xff]
          %v1715 = vld [vmem:[%s5 + $0x88] sm:$0xff]
          %v1716 = vld [vmem:[%s5 + $0x90] sm:$0xff]
          %v1717 = vld [vmem:[%s5 + $0x98] sm:$0xff]
          %v1718 = vld [vmem:[%s5 + $0xa0] sm:$0xff]
          %v1719 = vld [vmem:[%s5 + $0xa8] sm:$0xff]
          %v1720 = vld [vmem:[%s5 + $0xb0] sm:$0xff]
          %v1721 = vld [vmem:[%s5 + $0xb8] sm:$0xff]
          %v1722 = vld [vmem:[%s5 + $0xc0] sm:$0xff]
          %v1723 = vld [vmem:[%s5 + $0xc8] sm:$0xff]
          %v1724 = vld [vmem:[%s5 + $0xd0] sm:$0xff]
          %v1725 = vld [vmem:[%s5 + $0xd8] sm:$0xff]
          %v1726 = vld [vmem:[%s5 + $0xe0] sm:$0xff]
          %v1727 = vld [vmem:[%s5 + $0xe8] sm:$0xff]
          %v1728 = vld [vmem:[%s5 + $0xf0] sm:$0xff]
          %v1729 = vld [vmem:[%s5 + $0xf8] sm:$0xff]
          %v1730 = vld [vmem:[%s5 + $0x100] sm:$0xff]
          %v1731 = vld [vmem:[%s5 + $0x108] sm:$0xff]
          %v1732 = vld [vmem:[%s5 + $0x110] sm:$0xff]
          %v1733 = vld [vmem:[%s5 + $0x118] sm:$0xff]
          %v1734 = vld [vmem:[%s5 + $0x120] sm:$0xff]
          %v1735 = vld [vmem:[%s5 + $0x128] sm:$0xff]
          %v1736 = vld [vmem:[%s5 + $0x130] sm:$0xff]
          %v1737 = vld [vmem:[%s5 + $0x138] sm:$0xff]
          %v1738 = vld [vmem:[%s5 + $0x140] sm:$0xff]
          %v1739 = vld [vmem:[%s5 + $0x148] sm:$0xff]
          %v1740 = vld [vmem:[%s5 + $0x150] sm:$0xff]
          %v1741 = vld [vmem:[%s5 + $0x158] sm:$0xff]
          %v1742 = vld [vmem:[%s5 + $0x160] sm:$0xff]
          %v1743 = vld [vmem:[%s5 + $0x168] sm:$0xff]
          %v1744 = vld [vmem:[%s5 + $0x170] sm:$0xff]
          %v1745 = vld [vmem:[%s5 + $0x178] sm:$0xff]
          %v1746 = vld [vmem:[%s5 + $0x180] sm:$0xff]
          %v1747 = vld [vmem:[%s5 + $0x188] sm:$0xff]
          %v1748 = vld [vmem:[%s5 + $0x190] sm:$0xff]
          %v1749 = vld [vmem:[%s5 + $0x198] sm:$0xff]
          %v1750 = vld [vmem:[%s5 + $0x1a0] sm:$0xff]
          %v1751 = vld [vmem:[%s5 + $0x1a8] sm:$0xff]
          %v1752 = vld [vmem:[%s5 + $0x1b0] sm:$0xff]
          %v1753 = vld [vmem:[%s5 + $0x1b8] sm:$0xff]
          %v1754 = vld [vmem:[%s5 + $0x1c0] sm:$0xff]
          %v1755 = vld [vmem:[%s5 + $0x1c8] sm:$0xff]
          %v1756 = vld [vmem:[%s5 + $0x1d0] sm:$0xff]
          %v1757 = vld [vmem:[%s5 + $0x1d8] sm:$0xff]
          %v1758 = vld [vmem:[%s5 + $0x1e0] sm:$0xff]
          %v1759 = vld [vmem:[%s5 + $0x1e8] sm:$0xff]
          %v1760 = vld [vmem:[%s5 + $0x1f0] sm:$0xff]
          %v1761 = vld [vmem:[%s5 + $0x1f8] sm:$0xff]
          %v1762 = vld [vmem:[%s6] sm:$0x1]
          %v1764 = vperm.slane %v1762, 0
          %1766 = vmatpush.msra.mxu0 %v1713
          %1767 = vmatpush.msra.mxu0 %v1712
          %1768 = vmatpush.msra.mxu0 %v1711
          %1769 = vmatpush.msra.mxu0 %v1710
          %1770 = vmatpush.msra.mxu0 %v1709
          %1771 = vmatpush.msra.mxu0 %v1708
          %1772 = vmatpush.msra.mxu0 %v1707
          %1773 = vmatpush.msra.mxu0 %v1706
          %1774 = vmatpush.msra.mxu0 %v1705
          %1775 = vmatpush.msra.mxu0 %v1704
          %1776 = vmatpush.msra.mxu0 %v1703
          %1777 = vmatpush.msra.mxu0 %v1702
          %1778 = vmatpush.msra.mxu0 %v1701
          %1779 = vmatpush.msra.mxu0 %v1700
          %1780 = vmatpush.msra.mxu0 %v1699
          %1781 = vmatpush.msra.mxu0 %v1698
          %1782 = vmatmul.f32.gmra.mxu0 %v1690
          %v1783 = vpop.f32.mrf.mxu0
          %v1784 = vadd.f32 %v1764, %v1783
          %1785 = vmatmul.f32.gmra.mxu0 %v1694
          %v1786 = vpop.f32.mrf.mxu0
          %v1787 = vadd.f32 %v1764, %v1786
          %1788 = vdwg.mxu0
          %1789 = vmatpush.msra.mxu0 %v1729
          %1790 = vmatpush.msra.mxu0 %v1728
          %1791 = vmatpush.msra.mxu0 %v1727
          %1792 = vmatpush.msra.mxu0 %v1726
          %1793 = vmatpush.msra.mxu0 %v1725
          %1794 = vmatpush.msra.mxu0 %v1724
          %1795 = vmatpush.msra.mxu0 %v1723
          %1796 = vmatpush.msra.mxu0 %v1722
          %1797 = vmatpush.msra.mxu0 %v1721
          %1798 = vmatpush.msra.mxu0 %v1720
          %1799 = vmatpush.msra.mxu0 %v1719
          %1800 = vmatpush.msra.mxu0 %v1718
          %1801 = vmatpush.msra.mxu0 %v1717
          %1802 = vmatpush.msra.mxu0 %v1716
          %1803 = vmatpush.msra.mxu0 %v1715
          %1804 = vmatpush.msra.mxu0 %v1714
          %1805 = vmatmul.f32.gmra.mxu0 %v1691
          %v1806 = vpop.f32.mrf.mxu0
          %v1807 = vadd.f32 %v1784, %v1806
          %1808 = vmatmul.f32.gmra.mxu0 %v1695
          %v1809 = vpop.f32.mrf.mxu0
          %v1810 = vadd.f32 %v1787, %v1809
          %1811 = vdwg.mxu0
          %1812 = vmatpush.msra.mxu0 %v1745
          %1813 = vmatpush.msra.mxu0 %v1744
          %1814 = vmatpush.msra.mxu0 %v1743
          %1815 = vmatpush.msra.mxu0 %v1742
          %1816 = vmatpush.msra.mxu0 %v1741
          %1817 = vmatpush.msra.mxu0 %v1740
          %1818 = vmatpush.msra.mxu0 %v1739
          %1819 = vmatpush.msra.mxu0 %v1738
          %1820 = vmatpush.msra.mxu0 %v1737
          %1821 = vmatpush.msra.mxu0 %v1736
          %1822 = vmatpush.msra.mxu0 %v1735
          %1823 = vmatpush.msra.mxu0 %v1734
          %1824 = vmatpush.msra.mxu0 %v1733
          %1825 = vmatpush.msra.mxu0 %v1732
          %1826 = vmatpush.msra.mxu0 %v1731
          %1827 = vmatpush.msra.mxu0 %v1730
          %1828 = vmatmul.f32.gmra.mxu0 %v1692
          %v1829 = vpop.f32.mrf.mxu0
          %v1830 = vadd.f32 %v1807, %v1829
          %1831 = vmatmul.f32.gmra.mxu0 %v1696
          %v1832 = vpop.f32.mrf.mxu0
          %v1833 = vadd.f32 %v1810, %v1832
          %1834 = vdwg.mxu0
          %1835 = vmatpush.msra.mxu0 %v1761
          %1836 = vmatpush.msra.mxu0 %v1760
          %1837 = vmatpush.msra.mxu0 %v1759
          %1838 = vmatpush.msra.mxu0 %v1758
          %1839 = vmatpush.msra.mxu0 %v1757
          %1840 = vmatpush.msra.mxu0 %v1756
          %1841 = vmatpush.msra.mxu0 %v1755
          %1842 = vmatpush.msra.mxu0 %v1754
          %1843 = vmatpush.msra.mxu0 %v1753
          %1844 = vmatpush.msra.mxu0 %v1752
          %1845 = vmatpush.msra.mxu0 %v1751
          %1846 = vmatpush.msra.mxu0 %v1750
          %1847 = vmatpush.msra.mxu0 %v1749
          %1848 = vmatpush.msra.mxu0 %v1748
          %1849 = vmatpush.msra.mxu0 %v1747
          %1850 = vmatpush.msra.mxu0 %v1746
          %1851 = vmatmul.f32.gmra.mxu0 %v1693
          %v1852 = vpop.f32.mrf.mxu0
          %v1853 = vadd.f32 %v1830, %v1852
          %1854 = vmatmul.f32.gmra.mxu0 %v1697
          %v1855 = vpop.f32.mrf.mxu0
          %v1856 = vadd.f32 %v1833, %v1855
          %1857 = vdwg.mxu0
          %v1858 = vmax.f32 %v1853, 0.0
          %v1859 = vmax.f32 %v1856, 0.0
          %v1860 = vmin.f32 %v1858, 1.0
          %v1861 = vmin.f32 %v1859, 1.0
          %v1862 = vld [vmem:[%s7] sm:$0xff]
          %v1863 = vld [vmem:[%s7 + $0x8] sm:$0xff]
          %v1864 = vld [vmem:[%s7 + $0x10] sm:$0xff]
          %v1865 = vld [vmem:[%s7 + $0x18] sm:$0xff]
          %v1866 = vld [vmem:[%s8] sm:$0x1]
          %v1868 = vperm.slane %v1866, 0
          %vm1870 = vcmask 261120
          %v1872 = vsel %vm1870, %v1860, 0
          %v1875 = vsel %vm1870, %v1861, 0
          %1877 = vmatpush.msra.mxu0 0.0
          %1878 = vmatpush.msra.mxu0 0.0
          %1879 = vmatpush.msra.mxu0 0.0
          %1880 = vmatpush.msra.mxu0 0.0
          %1881 = vmatpush.msra.mxu0 0.0
          %1882 = vmatpush.msra.mxu0 0.0
          %1883 = vmatpush.msra.mxu0 0.0
          %1884 = vmatpush.msra.mxu0 0.0
          %1885 = vmatpush.msra.mxu0 0.0
          %1886 = vmatpush.msra.mxu0 0.0
          %1887 = vmatpush.msra.mxu0 0.0
          %1888 = vmatpush.msra.mxu0 0.0
          %1889 = vmatpush.msra.mxu0 %v1865
          %1890 = vmatpush.msra.mxu0 %v1864
          %1891 = vmatpush.msra.mxu0 %v1863
          %1892 = vmatpush.msra.mxu0 %v1862
          %1893 = vmatmul.f32.gmra.mxu0 %v1872
          %v1894 = vpop.f32.mrf.mxu0
          %v1895 = vadd.f32 %v1868, %v1894
          %1896 = vmatmul.f32.gmra.mxu0 %v1875
          %v1897 = vpop.f32.mrf.mxu0
          %v1898 = vadd.f32 %v1868, %v1897
          %1899 = vdwg.mxu0
          %v1900 = vmax.f32 %v1895, 0.0
          %v1901 = vmax.f32 %v1898, 0.0
          %v1902 = vmin.f32 %v1900, 1.0
          %v1903 = vmin.f32 %v1901, 1.0
          %v1904 = vld [vmem:[%s9] sm:$0xff]
          %v1905 = vld [vmem:[%s9 + $0x8] sm:$0xff]
          %v1906 = vld [vmem:[%s9 + $0x10] sm:$0xff]
          %v1907 = vld [vmem:[%s9 + $0x18] sm:$0xff]
          %v1908 = vld [vmem:[#allocation3] sm:$0x1]
          %v1910 = vperm.slane %v1908, 0
          %v1913 = vsel %vm1870, %v1902, 0
          %v1916 = vsel %vm1870, %v1903, 0
          %1918 = vmatpush.msra.mxu0 0.0
          %1919 = vmatpush.msra.mxu0 0.0
          %1920 = vmatpush.msra.mxu0 0.0
          %1921 = vmatpush.msra.mxu0 0.0
          %1922 = vmatpush.msra.mxu0 0.0
          %1923 = vmatpush.msra.mxu0 0.0
          %1924 = vmatpush.msra.mxu0 0.0
          %1925 = vmatpush.msra.mxu0 0.0
          %1926 = vmatpush.msra.mxu0 0.0
          %1927 = vmatpush.msra.mxu0 0.0
          %1928 = vmatpush.msra.mxu0 0.0
          %1929 = vmatpush.msra.mxu0 0.0
          %1930 = vmatpush.msra.mxu0 %v1907
          %1931 = vmatpush.msra.mxu0 %v1906
          %1932 = vmatpush.msra.mxu0 %v1905
          %1933 = vmatpush.msra.mxu0 %v1904
          %1934 = vmatmul.f32.gmra.mxu0 %v1913
          %v1935 = vpop.f32.mrf.mxu0
          %v1936 = vadd.f32 %v1910, %v1935
          %1937 = vmatmul.f32.gmra.mxu0 %v1916
          %v1938 = vpop.f32.mrf.mxu0
          %v1939 = vadd.f32 %v1910, %v1938
          %1940 = vdwg.mxu0
          %v1941 = vmax.f32 %v1936, 0.0
          %v1942 = vmax.f32 %v1939, 0.0
          %v1943 = vmin.f32 %v1941, 1.0
          %v1944 = vmin.f32 %v1942, 1.0
          %vm1945 = vcmask 7168
          %1946 = vst.msk [vmem:[%s574] sm:$0xff] %vm1945, %v1943
          %1947 = vst.msk [vmem:[%s574 + $0x8] sm:$0xff] %vm1945, %v1944
        $region126: #{tpu_custom_call.1} parent=101 // pred_fallthru
          _
        %s1948 = smul.u32 2, %s34
        %p1949 = scmp.lt.s32.totalorder %s1948, 3
        %s1950 = scalar_select %p1949, %s1948, 3
        %s1951 = smul.addr %s1950, 8
        %s1952 = scalar_lea.vmem %s11, %s1951
        // Predicated region
        $region127: #{tpu_custom_call.1} parent=101 // pred_check
          %p1953 = pneg %p315
        $region128: #{tpu_custom_call.1} parent=101 // pred_check_branch
          %1955 = sbr.rel (%p1953) target = $region130
        $region129: #{tpu_custom_call.1} parent=101 // pred_region
          %s1956 = smul.u32 2, %s34
        $region130: #{tpu_custom_call.1} parent=101 // pred_fallthru
          _
      $region102: #{tpu_custom_call.1} parent=5 // pred_fallthru
        _
      %p1957 = scmp.le.s32.totalorder 2, %s25
      // Predicated region
      $region131: #{tpu_custom_call.1} parent=5 // pred_check
        %p1958 = pneg %p1957
      $region132: #{tpu_custom_call.1} parent=5 // pred_check_branch
        %1960 = sbr.rel (%p1958) target = $region134
      $region133: #{tpu_custom_call.1} parent=5 // pred_region
        %s1961 = ssub.s32 %s25, 2
        // Predicated region
        $region135: #{tpu_custom_call.1} parent=133 // pred_check
          %p1962 = pneg %p321
        $region136: #{tpu_custom_call.1} parent=133 // pred_check_branch
          %1964 = sbr.rel (%p1962) target = $region138
        $region137: #{tpu_custom_call.1} parent=133 // pred_region
          %s1965 = smul.u32 2, %s36
          %p1966 = scmp.lt.s32.totalorder %s1965, 3
          %s1967 = scalar_select %p1966, %s1965, 3
          %s1968 = smul.addr %s1967, 8
          %s1969 = scalar_lea.vmem %s11, %s1968
        $region138: #{tpu_custom_call.1} parent=133 // pred_fallthru
          _
      $region134: #{tpu_custom_call.1} parent=5 // pred_fallthru
        _
    $region6: #{tpu_custom_call.1} parent=1 // loop_footer
      %s29 = sadd.s32 1, %s25
    $region7: #{tpu_custom_call.1} parent=1 // loop_footer_branch
      %24 = sbr.rel target = $region3
    $region8: #{tpu_custom_call.1} parent=1 // loop_exit
      _
    %1970 = vsyncpa [#allocation7], 1
    %s1971 = scalar_lea.sflag [#allocation7], 1
    %1972 = vsyncpa %s1971, 1
    %1973 = vsyncpa [#allocation9], 1
    %s1974 = scalar_lea.sflag [#allocation9], 1
    %1975 = vsyncpa %s1974, 1

</llo_original>
